<compile_context>
chip_gen: v7x
topology: tpu7x:2x2x1
jax: 0.10.0
libtpu: 0.0.40
codegen_flags: <defaults>
</compile_context>

<pallas_src>
import functools
import math

import jax
import jax.numpy as jnp
from jax.experimental import pallas as pl
from jax.experimental.pallas import tpu as pltpu


def _layer_norm(x, gamma, beta, eps=1e-5):
    # x: (M, D), gamma/beta: (1, D). Matches torch.nn.LayerNorm (biased variance).
    mean = jnp.mean(x, axis=-1, keepdims=True)
    var = jnp.mean((x - mean) ** 2, axis=-1, keepdims=True)
    inv = jax.lax.rsqrt(var + eps)
    return (x - mean) * inv * gamma + beta


def _encoder_cell_kernel(x_ref, wqkv_ref, wfc_ref,
                         g_att_ref, b_att_ref,
                         w1_ref, b1_ref, w2_ref, b2_ref,
                         g_ff_ref, b_ff_ref,
                         o_ref, *, h, att_size, block_b, seq, compute_dtype):
    cdt = compute_dtype
    bb, S = block_b, seq
    D = h * att_size
    M = bb * S

    x = x_ref[...].astype(jnp.float32)          # (bb, S, D)
    xf = x.reshape(M, D)                        # merge leading dims (layout-trivial)

    # --- fused QKV projection: one MXU op, M = bb*S rows, N = 3D columns.
    # Q columns of wqkv are pre-scaled by 1/sqrt(h) in the wrapper.
    qkv = jnp.dot(xf.astype(cdt), wqkv_ref[...],
                  preferred_element_type=jnp.float32)        # (M, 3D) f32
    qkv3 = qkv.reshape(bb, S, 3 * D)                         # split leading dim only

    # --- multi-head self-attention (q = k = v = x, mask = None) ---
    att_out = jnp.zeros((M, D), jnp.float32)
    for hi in range(h):                          # static unrolled loop over heads
        lo = hi * att_size
        q = qkv3[:, :, lo:lo + att_size]                     # (bb, S, a)
        k = qkv3[:, :, D + lo:D + lo + att_size]             # (bb, S, a)
        v = qkv3[:, :, 2 * D + lo:2 * D + lo + att_size]     # (bb, S, a)

        s = jnp.einsum("bqa,bka->bqk", q.astype(cdt), k.astype(cdt),
                       preferred_element_type=jnp.float32)   # (bb, S, S)
        s = s - jnp.max(s, axis=-1, keepdims=True)
        e = jnp.exp(s)
        inv_den = pl.reciprocal(jnp.sum(e, axis=-1, keepdims=True), approx=True)
        alpha = e * inv_den                                  # softmax over keys
        ctx = jnp.einsum("bqk,bka->bqa", alpha.astype(cdt), v.astype(cdt),
                         preferred_element_type=jnp.float32)  # (bb, S, a)

        # concat(heads) @ Wfc  ==  sum_h head_h @ Wfc[h*a:(h+1)*a, :]
        att_out = att_out + jnp.dot(ctx.reshape(M, att_size).astype(cdt),
                                    wfc_ref[hi],
                                    preferred_element_type=jnp.float32)

    # --- residual + LayerNorm (attention branch); dropout = identity (eval) ---
    y = _layer_norm(att_out + xf, g_att_ref[...], b_att_ref[...])

    # --- feed-forward ---
    h1 = jnp.dot(y.astype(cdt), w1_ref[...],
                 preferred_element_type=jnp.float32) + b1_ref[...]
    h1 = jnp.maximum(h1, 0.0)
    lin = jnp.dot(h1.astype(cdt), w2_ref[...],
                  preferred_element_type=jnp.float32) + b2_ref[...]

    # --- residual + LayerNorm (FF branch) ---
    out = _layer_norm(lin + y, g_ff_ref[...], b_ff_ref[...])

    o_ref[...] = out.reshape(bb, S, D).astype(o_ref.dtype)


def transformer_encoder_cell(x, params, *, h, block_b=None,
                             compute_dtype=jnp.float32):
    """x: (B, S, D) float32. params: dict of weights (see init in __main__)."""
    B, S, D = x.shape
    assert D % h == 0
    att_size = D // h
    fc = params["w1"].shape[1]

    if block_b is None:
        # largest divisor of B whose row count keeps the MXU M dimension filled
        block_b = 1
        for d in range(1, B + 1):
            if B % d == 0 and d * S <= 256:
                block_b = d
    assert B % block_b == 0

    # fused QKV weight; Q columns pre-scaled by 1/sqrt(h) (matches the PyTorch code)
    wqkv = jnp.concatenate(
        [params["wq"] * (1.0 / math.sqrt(float(h))), params["wk"], params["wv"]],
        axis=1).astype(compute_dtype)                                # (D, 3D)
    # output projection split by head rows -> per-head MXU accumulation (no concat)
    wfc_heads = params["wfc"].reshape(h, att_size, D).astype(compute_dtype)
    w1 = params["w1"].astype(compute_dtype)
    w2 = params["w2"].astype(compute_dtype)

    kernel = functools.partial(_encoder_cell_kernel, h=h, att_size=att_size,
                               block_b=block_b, seq=S, compute_dtype=compute_dtype)

    const2d = lambda shape: pl.BlockSpec(shape, lambda b: (0, 0))
    const3d = lambda shape: pl.BlockSpec(shape, lambda b: (0, 0, 0))

    # rough VMEM footprint; only constrain the compiler when the tiles are big
    # (relevant for v7x's 64 MiB VMEM at realistic D / fc).
    itemsize = jnp.dtype(compute_dtype).itemsize
    M = block_b * S
    est = (2 * 2 * M * D * 4                                         # x + out (dbl buf)
           + 2 * (wqkv.size + wfc_heads.size + w1.size + w2.size) * itemsize
           + 2 * (6 * D + 2 * fc) * 4                                # biases / LN params
           + 4 * M * (3 * D + fc + 4 * D))                           # f32 intermediates
    vmem_limit = int(min(1.25 * est, 100 * 2**20)) if est > 32 * 2**20 else None

    return pl.pallas_call(
        kernel,
        out_shape=jax.ShapeDtypeStruct((B, S, D), x.dtype),
        grid_spec=pltpu.PrefetchScalarGridSpec(
            num_scalar_prefetch=0,
            grid=(B // block_b,),
            in_specs=[
                pl.BlockSpec((block_b, S, D), lambda b: (b, 0, 0)),  # x
                const2d((D, 3 * D)),                                 # fused Wqkv
                const3d((h, att_size, D)),                           # Wfc (per head)
                const2d((1, D)), const2d((1, D)),                    # LN-att gamma/beta
                const2d((D, fc)), const2d((1, fc)),                  # FF w1, b1
                const2d((fc, D)), const2d((1, D)),                   # FF w2, b2
                const2d((1, D)), const2d((1, D)),                    # LN-ff gamma/beta
            ],
            out_specs=pl.BlockSpec((block_b, S, D), lambda b: (b, 0, 0)),
        ),
        compiler_params=pltpu.CompilerParams(
            dimension_semantics=("parallel",),
            vmem_limit_bytes=vmem_limit),
    )(x, wqkv, wfc_heads,
      params["g_att"], params["b_att"],
      w1, params["b1"], w2, params["b2"],
      params["g_ff"], params["b_ff"])


def _reference(x, params, *, h):
    """Pure-JAX reference replicating the PyTorch forward (eval mode, mask=None)."""
    B, S, D = x.shape
    a = D // h
    Q = (x @ params["wq"]).reshape(B, S, h, a).transpose(0, 2, 1, 3)
    K = (x @ params["wk"]).reshape(B, S, h, a).transpose(0, 2, 1, 3)
    V = (x @ params["wv"]).reshape(B, S, h, a).transpose(0, 2, 1, 3)
    alpha = jax.nn.softmax(jnp.einsum("bhqa,bhka->bhqk", Q, K) / math.sqrt(h), axis=-1)
    att = jnp.einsum("bhqk,bhka->bhqa", alpha, V).transpose(0, 2, 1, 3).reshape(B, S, D)
    att = att @ params["wfc"]

    def ln(y, g, b, eps=1e-5):
        m = jnp.mean(y, -1, keepdims=True)
        v = jnp.mean((y - m) ** 2, -1, keepdims=True)
        return (y - m) / jnp.sqrt(v + eps) * g + b

    norm_att = ln(att + x, params["g_att"], params["b_att"])
    lin = jnp.maximum(norm_att @ params["w1"] + params["b1"], 0.0) @ params["w2"] + params["b2"]
    return ln(lin + norm_att, params["g_ff"], params["b_ff"])


if __name__ == "__main__":
    B, S, D, H, FC = 4, 8, 32, 4, 64

    key = jax.random.PRNGKey(0)
    ks = jax.random.split(key, 9)
    scale_d = 1.0 / math.sqrt(D)
    scale_fc = 1.0 / math.sqrt(FC)
    params = {
        "wq": jax.random.normal(ks[0], (D, D), jnp.float32) * scale_d,
        "wk": jax.random.normal(ks[1], (D, D), jnp.float32) * scale_d,
        "wv": jax.random.normal(ks[2], (D, D), jnp.float32) * scale_d,
        "wfc": jax.random.normal(ks[3], (D, D), jnp.float32) * scale_d,
        "g_att": jnp.ones((1, D), jnp.float32),
        "b_att": jnp.zeros((1, D), jnp.float32),
        "w1": jax.random.normal(ks[4], (D, FC), jnp.float32) * scale_d,
        "b1": jax.random.normal(ks[5], (1, FC), jnp.float32) * 0.01,
        "w2": jax.random.normal(ks[6], (FC, D), jnp.float32) * scale_fc,
        "b2": jax.random.normal(ks[7], (1, D), jnp.float32) * 0.01,
        "g_ff": jnp.ones((1, D), jnp.float32),
        "b_ff": jnp.zeros((1, D), jnp.float32),
    }
    x = jax.random.normal(ks[8], (B, S, D), jnp.float32)

    ref = _reference(x, params, h=H)

    # f32 matmul path; block_b=2 -> 2 parallel grid steps (both v7x TCs busy),
    # 16 rows per projection/FF matmul instead of 8.
    out = transformer_encoder_cell(x, params, h=H, block_b=2)
    out = jax.block_until_ready(out)
    assert out.shape == (B, S, D)
    # tolerance loosened vs exact f32 because the softmax denominator uses the
    # approximate EUP reciprocal (pl.reciprocal(approx=True)).
    assert jnp.allclose(out, ref, rtol=2e-2, atol=2e-2), "f32 kernel mismatch vs reference"

    # bf16 matmul-input path (native MXU dtype on v6e/v7x); f32 accumulation,
    # f32 softmax/LayerNorm statistics.  Compared against the f32 reference with a
    # correspondingly looser tolerance.
    out_bf16 = transformer_encoder_cell(x, params, h=H, block_b=2,
                                        compute_dtype=jnp.bfloat16)
    out_bf16 = jax.block_until_ready(out_bf16)
    assert jnp.allclose(out_bf16, ref, rtol=1e-1, atol=1e-1), "bf16 kernel mismatch vs reference"

    # TODO(synk): dropout (training mode) and the optional attention-mask path are
    # not implemented; this kernel reproduces the eval-mode forward with mask=None.
    print("KERNEL_OK")
</pallas_src>

<mosaic_0001>
module attributes {stable_mosaic.version = 11 : i64} {
  func.func @_encoder_cell_kernel(%arg0: i32, %arg1: memref<2x8x32xf32, #tpu.memory_space<vmem>>, %arg2: memref<32x96xf32, #tpu.memory_space<vmem>>, %arg3: memref<4x8x32xf32, #tpu.memory_space<vmem>>, %arg4: memref<1x32xf32, #tpu.memory_space<vmem>>, %arg5: memref<1x32xf32, #tpu.memory_space<vmem>>, %arg6: memref<32x64xf32, #tpu.memory_space<vmem>>, %arg7: memref<1x64xf32, #tpu.memory_space<vmem>>, %arg8: memref<64x32xf32, #tpu.memory_space<vmem>>, %arg9: memref<1x32xf32, #tpu.memory_space<vmem>>, %arg10: memref<1x32xf32, #tpu.memory_space<vmem>>, %arg11: memref<1x32xf32, #tpu.memory_space<vmem>>, %arg12: memref<2x8x32xf32, #tpu.memory_space<vmem>>) attributes {dimension_semantics = [#tpu.dimension_semantics<parallel>], iteration_bounds = array<i64: 2>, scalar_prefetch = 0 : i64, scratch_operands = 0 : i64, tpu.core_type = #tpu.core_type<tc>, window_params = [{transform_indices = @transform_0, window_bounds = array<i64: 2, 8, 32>}, {pipeline_mode = #tpu.pipeline_mode<synchronous>, transform_indices = @transform_1, window_bounds = array<i64: 32, 96>}, {pipeline_mode = #tpu.pipeline_mode<synchronous>, transform_indices = @transform_2, window_bounds = array<i64: 4, 8, 32>}, {pipeline_mode = #tpu.pipeline_mode<synchronous>, transform_indices = @transform_3, window_bounds = array<i64: 1, 32>}, {pipeline_mode = #tpu.pipeline_mode<synchronous>, transform_indices = @transform_4, window_bounds = array<i64: 1, 32>}, {pipeline_mode = #tpu.pipeline_mode<synchronous>, transform_indices = @transform_5, window_bounds = array<i64: 32, 64>}, {pipeline_mode = #tpu.pipeline_mode<synchronous>, transform_indices = @transform_6, window_bounds = array<i64: 1, 64>}, {pipeline_mode = #tpu.pipeline_mode<synchronous>, transform_indices = @transform_7, window_bounds = array<i64: 64, 32>}, {pipeline_mode = #tpu.pipeline_mode<synchronous>, transform_indices = @transform_8, window_bounds = array<i64: 1, 32>}, {pipeline_mode = #tpu.pipeline_mode<synchronous>, transform_indices = @transform_9, window_bounds = array<i64: 1, 32>}, {pipeline_mode = #tpu.pipeline_mode<synchronous>, transform_indices = @transform_10, window_bounds = array<i64: 1, 32>}, {transform_indices = @transform_11, window_bounds = array<i64: 2, 8, 32>}]} {
    %c0 = arith.constant 0 : index
    %c0_0 = arith.constant 0 : index
    %c0_1 = arith.constant 0 : index
    %0 = vector.load %arg1[%c0, %c0_0, %c0_1] : memref<2x8x32xf32, #tpu.memory_space<vmem>>, vector<2x8x32xf32>
    %1 = vector.shape_cast %0 : vector<2x8x32xf32> to vector<16x32xf32>
    %c0_2 = arith.constant 0 : index
    %c0_3 = arith.constant 0 : index
    %2 = vector.load %arg2[%c0_2, %c0_3] : memref<32x96xf32, #tpu.memory_space<vmem>>, vector<32x96xf32>
    %cst = arith.constant dense<0.000000e+00> : vector<16x96xf32>
    %3 = tpu.matmul %1, %2, %cst {dimension_numbers = #tpu.dot_dimension_numbers<[1], [0], [0], [1], [0, 0, 1, 1], [], []>} : vector<16x32xf32>, vector<32x96xf32>, vector<16x96xf32> -> vector<16x96xf32>
    %4 = vector.shape_cast %3 : vector<16x96xf32> to vector<2x8x96xf32>
    %cst_4 = arith.constant 0.000000e+00 : f32
    %5 = vector.broadcast %cst_4 : f32 to vector<16x32xf32>
    %6 = vector.extract_strided_slice %4 {offsets = [0, 0, 0], sizes = [2, 8, 8], strides = [1, 1, 1]} : vector<2x8x96xf32> to vector<2x8x8xf32>
    %7 = vector.extract_strided_slice %4 {offsets = [0, 0, 32], sizes = [2, 8, 8], strides = [1, 1, 1]} : vector<2x8x96xf32> to vector<2x8x8xf32>
    %8 = vector.extract_strided_slice %4 {offsets = [0, 0, 64], sizes = [2, 8, 8], strides = [1, 1, 1]} : vector<2x8x96xf32> to vector<2x8x8xf32>
    "tpu.trace_start"() <{level = 10 : i32, message = "bqa,bka->bqk"}> : () -> ()
    %cst_5 = arith.constant dense<0.000000e+00> : vector<2x8x8xf32>
    %9 = tpu.matmul %6, %7, %cst_5 {dimension_numbers = #tpu.dot_dimension_numbers<[2], [2], [1], [1], [0, 0, 0, 1, 1, 1], [0], [0]>} : vector<2x8x8xf32>, vector<2x8x8xf32>, vector<2x8x8xf32> -> vector<2x8x8xf32>
    "tpu.trace_stop"() : () -> ()
    %cst_6 = arith.constant dense<0xFF800000> : vector<2x8xf32>
    %10 = vector.multi_reduction <maximumf>, %9, %cst_6 [2] : vector<2x8x8xf32> to vector<2x8xf32>
    %11 = vector.shape_cast %10 : vector<2x8xf32> to vector<2x8x1xf32>
    %12 = vector.broadcast %11 : vector<2x8x1xf32> to vector<2x8x8xf32>
    %13 = arith.subf %9, %12 : vector<2x8x8xf32>
    %14 = math.exp %13 : vector<2x8x8xf32>
    %cst_7 = arith.constant dense<0.000000e+00> : vector<2x8xf32>
    %15 = vector.multi_reduction <add>, %14, %cst_7 [2] : vector<2x8x8xf32> to vector<2x8xf32>
    %16 = vector.shape_cast %15 : vector<2x8xf32> to vector<2x8x1xf32>
    %17 = tpu.reciprocal %16 {approx = true} : vector<2x8x1xf32> -> vector<2x8x1xf32>
    %18 = vector.broadcast %17 : vector<2x8x1xf32> to vector<2x8x8xf32>
    %19 = arith.mulf %14, %18 : vector<2x8x8xf32>
    "tpu.trace_start"() <{level = 10 : i32, message = "bqk,bka->bqa"}> : () -> ()
    %cst_8 = arith.constant dense<0.000000e+00> : vector<2x8x8xf32>
    %20 = tpu.matmul %19, %8, %cst_8 {dimension_numbers = #tpu.dot_dimension_numbers<[2], [1], [1], [2], [0, 0, 0, 1, 1, 2], [0], [0]>} : vector<2x8x8xf32>, vector<2x8x8xf32>, vector<2x8x8xf32> -> vector<2x8x8xf32>
    "tpu.trace_stop"() : () -> ()
    %21 = vector.shape_cast %20 : vector<2x8x8xf32> to vector<16x8xf32>
    %c0_9 = arith.constant 0 : index
    %c0_10 = arith.constant 0 : index
    %c0_11 = arith.constant 0 : index
    %22 = vector.load %arg3[%c0_9, %c0_10, %c0_11] : memref<4x8x32xf32, #tpu.memory_space<vmem>>, vector<1x8x32xf32>
    %23 = vector.shape_cast %22 : vector<1x8x32xf32> to vector<8x32xf32>
    %cst_12 = arith.constant dense<0.000000e+00> : vector<16x32xf32>
    %24 = tpu.matmul %21, %23, %cst_12 {dimension_numbers = #tpu.dot_dimension_numbers<[1], [0], [0], [1], [0, 0, 1, 1], [], []>} : vector<16x8xf32>, vector<8x32xf32>, vector<16x32xf32> -> vector<16x32xf32>
    %25 = arith.addf %5, %24 : vector<16x32xf32>
    %26 = vector.extract_strided_slice %4 {offsets = [0, 0, 8], sizes = [2, 8, 8], strides = [1, 1, 1]} : vector<2x8x96xf32> to vector<2x8x8xf32>
    %27 = vector.extract_strided_slice %4 {offsets = [0, 0, 40], sizes = [2, 8, 8], strides = [1, 1, 1]} : vector<2x8x96xf32> to vector<2x8x8xf32>
    %28 = vector.extract_strided_slice %4 {offsets = [0, 0, 72], sizes = [2, 8, 8], strides = [1, 1, 1]} : vector<2x8x96xf32> to vector<2x8x8xf32>
    "tpu.trace_start"() <{level = 10 : i32, message = "bqa,bka->bqk"}> : () -> ()
    %cst_13 = arith.constant dense<0.000000e+00> : vector<2x8x8xf32>
    %29 = tpu.matmul %26, %27, %cst_13 {dimension_numbers = #tpu.dot_dimension_numbers<[2], [2], [1], [1], [0, 0, 0, 1, 1, 1], [0], [0]>} : vector<2x8x8xf32>, vector<2x8x8xf32>, vector<2x8x8xf32> -> vector<2x8x8xf32>
    "tpu.trace_stop"() : () -> ()
    %cst_14 = arith.constant dense<0xFF800000> : vector<2x8xf32>
    %30 = vector.multi_reduction <maximumf>, %29, %cst_14 [2] : vector<2x8x8xf32> to vector<2x8xf32>
    %31 = vector.shape_cast %30 : vector<2x8xf32> to vector<2x8x1xf32>
    %32 = vector.broadcast %31 : vector<2x8x1xf32> to vector<2x8x8xf32>
    %33 = arith.subf %29, %32 : vector<2x8x8xf32>
    %34 = math.exp %33 : vector<2x8x8xf32>
    %cst_15 = arith.constant dense<0.000000e+00> : vector<2x8xf32>
    %35 = vector.multi_reduction <add>, %34, %cst_15 [2] : vector<2x8x8xf32> to vector<2x8xf32>
    %36 = vector.shape_cast %35 : vector<2x8xf32> to vector<2x8x1xf32>
    %37 = tpu.reciprocal %36 {approx = true} : vector<2x8x1xf32> -> vector<2x8x1xf32>
    %38 = vector.broadcast %37 : vector<2x8x1xf32> to vector<2x8x8xf32>
    %39 = arith.mulf %34, %38 : vector<2x8x8xf32>
    "tpu.trace_start"() <{level = 10 : i32, message = "bqk,bka->bqa"}> : () -> ()
    %cst_16 = arith.constant dense<0.000000e+00> : vector<2x8x8xf32>
    %40 = tpu.matmul %39, %28, %cst_16 {dimension_numbers = #tpu.dot_dimension_numbers<[2], [1], [1], [2], [0, 0, 0, 1, 1, 2], [0], [0]>} : vector<2x8x8xf32>, vector<2x8x8xf32>, vector<2x8x8xf32> -> vector<2x8x8xf32>
    "tpu.trace_stop"() : () -> ()
    %41 = vector.shape_cast %40 : vector<2x8x8xf32> to vector<16x8xf32>
    %c1 = arith.constant 1 : index
    %c0_17 = arith.constant 0 : index
    %c0_18 = arith.constant 0 : index
    %42 = vector.load %arg3[%c1, %c0_17, %c0_18] : memref<4x8x32xf32, #tpu.memory_space<vmem>>, vector<1x8x32xf32>
    %43 = vector.shape_cast %42 : vector<1x8x32xf32> to vector<8x32xf32>
    %cst_19 = arith.constant dense<0.000000e+00> : vector<16x32xf32>
    %44 = tpu.matmul %41, %43, %cst_19 {dimension_numbers = #tpu.dot_dimension_numbers<[1], [0], [0], [1], [0, 0, 1, 1], [], []>} : vector<16x8xf32>, vector<8x32xf32>, vector<16x32xf32> -> vector<16x32xf32>
    %45 = arith.addf %25, %44 : vector<16x32xf32>
    %46 = vector.extract_strided_slice %4 {offsets = [0, 0, 16], sizes = [2, 8, 8], strides = [1, 1, 1]} : vector<2x8x96xf32> to vector<2x8x8xf32>
    %47 = vector.extract_strided_slice %4 {offsets = [0, 0, 48], sizes = [2, 8, 8], strides = [1, 1, 1]} : vector<2x8x96xf32> to vector<2x8x8xf32>
    %48 = vector.extract_strided_slice %4 {offsets = [0, 0, 80], sizes = [2, 8, 8], strides = [1, 1, 1]} : vector<2x8x96xf32> to vector<2x8x8xf32>
    "tpu.trace_start"() <{level = 10 : i32, message = "bqa,bka->bqk"}> : () -> ()
    %cst_20 = arith.constant dense<0.000000e+00> : vector<2x8x8xf32>
    %49 = tpu.matmul %46, %47, %cst_20 {dimension_numbers = #tpu.dot_dimension_numbers<[2], [2], [1], [1], [0, 0, 0, 1, 1, 1], [0], [0]>} : vector<2x8x8xf32>, vector<2x8x8xf32>, vector<2x8x8xf32> -> vector<2x8x8xf32>
    "tpu.trace_stop"() : () -> ()
    %cst_21 = arith.constant dense<0xFF800000> : vector<2x8xf32>
    %50 = vector.multi_reduction <maximumf>, %49, %cst_21 [2] : vector<2x8x8xf32> to vector<2x8xf32>
    %51 = vector.shape_cast %50 : vector<2x8xf32> to vector<2x8x1xf32>
    %52 = vector.broadcast %51 : vector<2x8x1xf32> to vector<2x8x8xf32>
    %53 = arith.subf %49, %52 : vector<2x8x8xf32>
    %54 = math.exp %53 : vector<2x8x8xf32>
    %cst_22 = arith.constant dense<0.000000e+00> : vector<2x8xf32>
    %55 = vector.multi_reduction <add>, %54, %cst_22 [2] : vector<2x8x8xf32> to vector<2x8xf32>
    %56 = vector.shape_cast %55 : vector<2x8xf32> to vector<2x8x1xf32>
    %57 = tpu.reciprocal %56 {approx = true} : vector<2x8x1xf32> -> vector<2x8x1xf32>
    %58 = vector.broadcast %57 : vector<2x8x1xf32> to vector<2x8x8xf32>
    %59 = arith.mulf %54, %58 : vector<2x8x8xf32>
    "tpu.trace_start"() <{level = 10 : i32, message = "bqk,bka->bqa"}> : () -> ()
    %cst_23 = arith.constant dense<0.000000e+00> : vector<2x8x8xf32>
    %60 = tpu.matmul %59, %48, %cst_23 {dimension_numbers = #tpu.dot_dimension_numbers<[2], [1], [1], [2], [0, 0, 0, 1, 1, 2], [0], [0]>} : vector<2x8x8xf32>, vector<2x8x8xf32>, vector<2x8x8xf32> -> vector<2x8x8xf32>
    "tpu.trace_stop"() : () -> ()
    %61 = vector.shape_cast %60 : vector<2x8x8xf32> to vector<16x8xf32>
    %c2 = arith.constant 2 : index
    %c0_24 = arith.constant 0 : index
    %c0_25 = arith.constant 0 : index
    %62 = vector.load %arg3[%c2, %c0_24, %c0_25] : memref<4x8x32xf32, #tpu.memory_space<vmem>>, vector<1x8x32xf32>
    %63 = vector.shape_cast %62 : vector<1x8x32xf32> to vector<8x32xf32>
    %cst_26 = arith.constant dense<0.000000e+00> : vector<16x32xf32>
    %64 = tpu.matmul %61, %63, %cst_26 {dimension_numbers = #tpu.dot_dimension_numbers<[1], [0], [0], [1], [0, 0, 1, 1], [], []>} : vector<16x8xf32>, vector<8x32xf32>, vector<16x32xf32> -> vector<16x32xf32>
    %65 = arith.addf %45, %64 : vector<16x32xf32>
    %66 = vector.extract_strided_slice %4 {offsets = [0, 0, 24], sizes = [2, 8, 8], strides = [1, 1, 1]} : vector<2x8x96xf32> to vector<2x8x8xf32>
    %67 = vector.extract_strided_slice %4 {offsets = [0, 0, 56], sizes = [2, 8, 8], strides = [1, 1, 1]} : vector<2x8x96xf32> to vector<2x8x8xf32>
    %68 = vector.extract_strided_slice %4 {offsets = [0, 0, 88], sizes = [2, 8, 8], strides = [1, 1, 1]} : vector<2x8x96xf32> to vector<2x8x8xf32>
    "tpu.trace_start"() <{level = 10 : i32, message = "bqa,bka->bqk"}> : () -> ()
    %cst_27 = arith.constant dense<0.000000e+00> : vector<2x8x8xf32>
    %69 = tpu.matmul %66, %67, %cst_27 {dimension_numbers = #tpu.dot_dimension_numbers<[2], [2], [1], [1], [0, 0, 0, 1, 1, 1], [0], [0]>} : vector<2x8x8xf32>, vector<2x8x8xf32>, vector<2x8x8xf32> -> vector<2x8x8xf32>
    "tpu.trace_stop"() : () -> ()
    %cst_28 = arith.constant dense<0xFF800000> : vector<2x8xf32>
    %70 = vector.multi_reduction <maximumf>, %69, %cst_28 [2] : vector<2x8x8xf32> to vector<2x8xf32>
    %71 = vector.shape_cast %70 : vector<2x8xf32> to vector<2x8x1xf32>
    %72 = vector.broadcast %71 : vector<2x8x1xf32> to vector<2x8x8xf32>
    %73 = arith.subf %69, %72 : vector<2x8x8xf32>
    %74 = math.exp %73 : vector<2x8x8xf32>
    %cst_29 = arith.constant dense<0.000000e+00> : vector<2x8xf32>
    %75 = vector.multi_reduction <add>, %74, %cst_29 [2] : vector<2x8x8xf32> to vector<2x8xf32>
    %76 = vector.shape_cast %75 : vector<2x8xf32> to vector<2x8x1xf32>
    %77 = tpu.reciprocal %76 {approx = true} : vector<2x8x1xf32> -> vector<2x8x1xf32>
    %78 = vector.broadcast %77 : vector<2x8x1xf32> to vector<2x8x8xf32>
    %79 = arith.mulf %74, %78 : vector<2x8x8xf32>
    "tpu.trace_start"() <{level = 10 : i32, message = "bqk,bka->bqa"}> : () -> ()
    %cst_30 = arith.constant dense<0.000000e+00> : vector<2x8x8xf32>
    %80 = tpu.matmul %79, %68, %cst_30 {dimension_numbers = #tpu.dot_dimension_numbers<[2], [1], [1], [2], [0, 0, 0, 1, 1, 2], [0], [0]>} : vector<2x8x8xf32>, vector<2x8x8xf32>, vector<2x8x8xf32> -> vector<2x8x8xf32>
    "tpu.trace_stop"() : () -> ()
    %81 = vector.shape_cast %80 : vector<2x8x8xf32> to vector<16x8xf32>
    %c3 = arith.constant 3 : index
    %c0_31 = arith.constant 0 : index
    %c0_32 = arith.constant 0 : index
    %82 = vector.load %arg3[%c3, %c0_31, %c0_32] : memref<4x8x32xf32, #tpu.memory_space<vmem>>, vector<1x8x32xf32>
    %83 = vector.shape_cast %82 : vector<1x8x32xf32> to vector<8x32xf32>
    %cst_33 = arith.constant dense<0.000000e+00> : vector<16x32xf32>
    %84 = tpu.matmul %81, %83, %cst_33 {dimension_numbers = #tpu.dot_dimension_numbers<[1], [0], [0], [1], [0, 0, 1, 1], [], []>} : vector<16x8xf32>, vector<8x32xf32>, vector<16x32xf32> -> vector<16x32xf32>
    %85 = arith.addf %65, %84 : vector<16x32xf32>
    %86 = arith.addf %85, %1 : vector<16x32xf32>
    %c0_34 = arith.constant 0 : index
    %c0_35 = arith.constant 0 : index
    %87 = vector.load %arg4[%c0_34, %c0_35] : memref<1x32xf32, #tpu.memory_space<vmem>>, vector<1x32xf32>
    %c0_36 = arith.constant 0 : index
    %c0_37 = arith.constant 0 : index
    %88 = vector.load %arg5[%c0_36, %c0_37] : memref<1x32xf32, #tpu.memory_space<vmem>>, vector<1x32xf32>
    %cst_38 = arith.constant dense<0.000000e+00> : vector<16xf32>
    %89 = vector.multi_reduction <add>, %86, %cst_38 [1] : vector<16x32xf32> to vector<16xf32>
    %90 = vector.shape_cast %89 : vector<16xf32> to vector<16x1xf32>
    %cst_39 = arith.constant 3.200000e+01 : f32
    %91 = vector.broadcast %cst_39 : f32 to vector<16x1xf32>
    %92 = arith.divf %90, %91 : vector<16x1xf32>
    %93 = vector.broadcast %92 : vector<16x1xf32> to vector<16x32xf32>
    %94 = arith.subf %86, %93 : vector<16x32xf32>
    %95 = arith.mulf %94, %94 : vector<16x32xf32>
    %cst_40 = arith.constant dense<0.000000e+00> : vector<16xf32>
    %96 = vector.multi_reduction <add>, %95, %cst_40 [1] : vector<16x32xf32> to vector<16xf32>
    %97 = vector.shape_cast %96 : vector<16xf32> to vector<16x1xf32>
    %cst_41 = arith.constant 3.200000e+01 : f32
    %98 = vector.broadcast %cst_41 : f32 to vector<16x1xf32>
    %99 = arith.divf %97, %98 : vector<16x1xf32>
    %cst_42 = arith.constant 9.99999974E-6 : f32
    %100 = vector.broadcast %cst_42 : f32 to vector<16x1xf32>
    %101 = arith.addf %99, %100 : vector<16x1xf32>
    %102 = math.rsqrt %101 : vector<16x1xf32>
    %103 = vector.broadcast %92 : vector<16x1xf32> to vector<16x32xf32>
    %104 = arith.subf %86, %103 : vector<16x32xf32>
    %105 = vector.broadcast %102 : vector<16x1xf32> to vector<16x32xf32>
    %106 = arith.mulf %104, %105 : vector<16x32xf32>
    %107 = vector.broadcast %87 : vector<1x32xf32> to vector<16x32xf32>
    %108 = arith.mulf %106, %107 : vector<16x32xf32>
    %109 = vector.broadcast %88 : vector<1x32xf32> to vector<16x32xf32>
    %110 = arith.addf %108, %109 : vector<16x32xf32>
    %c0_43 = arith.constant 0 : index
    %c0_44 = arith.constant 0 : index
    %111 = vector.load %arg6[%c0_43, %c0_44] : memref<32x64xf32, #tpu.memory_space<vmem>>, vector<32x64xf32>
    %cst_45 = arith.constant dense<0.000000e+00> : vector<16x64xf32>
    %112 = tpu.matmul %110, %111, %cst_45 {dimension_numbers = #tpu.dot_dimension_numbers<[1], [0], [0], [1], [0, 0, 1, 1], [], []>} : vector<16x32xf32>, vector<32x64xf32>, vector<16x64xf32> -> vector<16x64xf32>
    %c0_46 = arith.constant 0 : index
    %c0_47 = arith.constant 0 : index
    %113 = vector.load %arg7[%c0_46, %c0_47] : memref<1x64xf32, #tpu.memory_space<vmem>>, vector<1x64xf32>
    %114 = vector.broadcast %113 : vector<1x64xf32> to vector<16x64xf32>
    %115 = arith.addf %112, %114 : vector<16x64xf32>
    %cst_48 = arith.constant 0.000000e+00 : f32
    %116 = vector.broadcast %cst_48 : f32 to vector<16x64xf32>
    %117 = arith.maximumf %115, %116 : vector<16x64xf32>
    %c0_49 = arith.constant 0 : index
    %c0_50 = arith.constant 0 : index
    %118 = vector.load %arg8[%c0_49, %c0_50] : memref<64x32xf32, #tpu.memory_space<vmem>>, vector<64x32xf32>
    %cst_51 = arith.constant dense<0.000000e+00> : vector<16x32xf32>
    %119 = tpu.matmul %117, %118, %cst_51 {dimension_numbers = #tpu.dot_dimension_numbers<[1], [0], [0], [1], [0, 0, 1, 1], [], []>} : vector<16x64xf32>, vector<64x32xf32>, vector<16x32xf32> -> vector<16x32xf32>
    %c0_52 = arith.constant 0 : index
    %c0_53 = arith.constant 0 : index
    %120 = vector.load %arg9[%c0_52, %c0_53] : memref<1x32xf32, #tpu.memory_space<vmem>>, vector<1x32xf32>
    %121 = vector.broadcast %120 : vector<1x32xf32> to vector<16x32xf32>
    %122 = arith.addf %119, %121 : vector<16x32xf32>
    %123 = arith.addf %122, %110 : vector<16x32xf32>
    %c0_54 = arith.constant 0 : index
    %c0_55 = arith.constant 0 : index
    %124 = vector.load %arg10[%c0_54, %c0_55] : memref<1x32xf32, #tpu.memory_space<vmem>>, vector<1x32xf32>
    %c0_56 = arith.constant 0 : index
    %c0_57 = arith.constant 0 : index
    %125 = vector.load %arg11[%c0_56, %c0_57] : memref<1x32xf32, #tpu.memory_space<vmem>>, vector<1x32xf32>
    %cst_58 = arith.constant dense<0.000000e+00> : vector<16xf32>
    %126 = vector.multi_reduction <add>, %123, %cst_58 [1] : vector<16x32xf32> to vector<16xf32>
    %127 = vector.shape_cast %126 : vector<16xf32> to vector<16x1xf32>
    %cst_59 = arith.constant 3.200000e+01 : f32
    %128 = vector.broadcast %cst_59 : f32 to vector<16x1xf32>
    %129 = arith.divf %127, %128 : vector<16x1xf32>
    %130 = vector.broadcast %129 : vector<16x1xf32> to vector<16x32xf32>
    %131 = arith.subf %123, %130 : vector<16x32xf32>
    %132 = arith.mulf %131, %131 : vector<16x32xf32>
    %cst_60 = arith.constant dense<0.000000e+00> : vector<16xf32>
    %133 = vector.multi_reduction <add>, %132, %cst_60 [1] : vector<16x32xf32> to vector<16xf32>
    %134 = vector.shape_cast %133 : vector<16xf32> to vector<16x1xf32>
    %cst_61 = arith.constant 3.200000e+01 : f32
    %135 = vector.broadcast %cst_61 : f32 to vector<16x1xf32>
    %136 = arith.divf %134, %135 : vector<16x1xf32>
    %cst_62 = arith.constant 9.99999974E-6 : f32
    %137 = vector.broadcast %cst_62 : f32 to vector<16x1xf32>
    %138 = arith.addf %136, %137 : vector<16x1xf32>
    %139 = math.rsqrt %138 : vector<16x1xf32>
    %140 = vector.broadcast %129 : vector<16x1xf32> to vector<16x32xf32>
    %141 = arith.subf %123, %140 : vector<16x32xf32>
    %142 = vector.broadcast %139 : vector<16x1xf32> to vector<16x32xf32>
    %143 = arith.mulf %141, %142 : vector<16x32xf32>
    %144 = vector.broadcast %124 : vector<1x32xf32> to vector<16x32xf32>
    %145 = arith.mulf %143, %144 : vector<16x32xf32>
    %146 = vector.broadcast %125 : vector<1x32xf32> to vector<16x32xf32>
    %147 = arith.addf %145, %146 : vector<16x32xf32>
    %148 = vector.shape_cast %147 : vector<16x32xf32> to vector<2x8x32xf32>
    %c0_63 = arith.constant 0 : index
    %c0_64 = arith.constant 0 : index
    %c0_65 = arith.constant 0 : index
    %149 = vector.load %arg12[%c0_63, %c0_64, %c0_65] : memref<2x8x32xf32, #tpu.memory_space<vmem>>, vector<2x8x32xf32>
    tpu.vector_store %arg12[%c0_63, %c0_64, %c0_65], %148 {strides = array<i32>} : memref<2x8x32xf32, #tpu.memory_space<vmem>>, vector<2x8x32xf32>,
    return
  }
  func.func @transform_0(%arg0: i32) -> (i32, i32, i32) {
    %c0_i32 = arith.constant 0 : i32
    %c0_i32_0 = arith.constant 0 : i32
    %c0_i32_1 = arith.constant 0 : i32
    return %arg0, %c0_i32, %c0_i32_0 : i32, i32, i32
  }
  func.func @transform_1(%arg0: i32) -> (i32, i32) {
    %c0_i32 = arith.constant 0 : i32
    %c0_i32_0 = arith.constant 0 : i32
    %c0_i32_1 = arith.constant 0 : i32
    return %c0_i32, %c0_i32_0 : i32, i32
  }
  func.func @transform_2(%arg0: i32) -> (i32, i32, i32) {
    %c0_i32 = arith.constant 0 : i32
    %c0_i32_0 = arith.constant 0 : i32
    %c0_i32_1 = arith.constant 0 : i32
    %c0_i32_2 = arith.constant 0 : i32
    return %c0_i32, %c0_i32_0, %c0_i32_1 : i32, i32, i32
  }
  func.func @transform_3(%arg0: i32) -> (i32, i32) {
    %c0_i32 = arith.constant 0 : i32
    %c0_i32_0 = arith.constant 0 : i32
    %c0_i32_1 = arith.constant 0 : i32
    return %c0_i32, %c0_i32_0 : i32, i32
  }
  func.func @transform_4(%arg0: i32) -> (i32, i32) {
    %c0_i32 = arith.constant 0 : i32
    %c0_i32_0 = arith.constant 0 : i32
    %c0_i32_1 = arith.constant 0 : i32
    return %c0_i32, %c0_i32_0 : i32, i32
  }
  func.func @transform_5(%arg0: i32) -> (i32, i32) {
    %c0_i32 = arith.constant 0 : i32
    %c0_i32_0 = arith.constant 0 : i32
    %c0_i32_1 = arith.constant 0 : i32
    return %c0_i32, %c0_i32_0 : i32, i32
  }
  func.func @transform_6(%arg0: i32) -> (i32, i32) {
    %c0_i32 = arith.constant 0 : i32
    %c0_i32_0 = arith.constant 0 : i32
    %c0_i32_1 = arith.constant 0 : i32
    return %c0_i32, %c0_i32_0 : i32, i32
  }
  func.func @transform_7(%arg0: i32) -> (i32, i32) {
    %c0_i32 = arith.constant 0 : i32
    %c0_i32_0 = arith.constant 0 : i32
    %c0_i32_1 = arith.constant 0 : i32
    return %c0_i32, %c0_i32_0 : i32, i32
  }
  func.func @transform_8(%arg0: i32) -> (i32, i32) {
    %c0_i32 = arith.constant 0 : i32
    %c0_i32_0 = arith.constant 0 : i32
    %c0_i32_1 = arith.constant 0 : i32
    return %c0_i32, %c0_i32_0 : i32, i32
  }
  func.func @transform_9(%arg0: i32) -> (i32, i32) {
    %c0_i32 = arith.constant 0 : i32
    %c0_i32_0 = arith.constant 0 : i32
    %c0_i32_1 = arith.constant 0 : i32
    return %c0_i32, %c0_i32_0 : i32, i32
  }
  func.func @transform_10(%arg0: i32) -> (i32, i32) {
    %c0_i32 = arith.constant 0 : i32
    %c0_i32_0 = arith.constant 0 : i32
    %c0_i32_1 = arith.constant 0 : i32
    return %c0_i32, %c0_i32_0 : i32, i32
  }
  func.func @transform_11(%arg0: i32) -> (i32, i32, i32) {
    %c0_i32 = arith.constant 0 : i32
    %c0_i32_0 = arith.constant 0 : i32
    %c0_i32_1 = arith.constant 0 : i32
    return %arg0, %c0_i32, %c0_i32_0 : i32, i32, i32
  }
}

</mosaic_0001>

<llo_original>
// kernel: tpu_custom_call.1
$region0: #{tpu_custom_call.1}
  #allocation0 [shape = 'u32[]', space=smem, size = 0x4, offset = 0x4, fixed_abs, tag = 'smem constant byte address 0x4 - core index']
  #allocation1 [shape = 'u32[144,128]{1,0:T(1,128)}', space=vmem, size = 0x12000, scoped, tag = 'internal scratch']
  %s0 = inlined_call_operand.vmem [shape: f32[4,8,32], index: 0, kind: input, shape index: {}]
  %s1 = inlined_call_operand.vmem [shape: f32[32,96], index: 1, kind: input, shape index: {}]
  %s2 = inlined_call_operand.vmem [shape: f32[4,8,32], index: 2, kind: input, shape index: {}]
  %s3 = inlined_call_operand.vmem [shape: f32[1,32], index: 3, kind: input, shape index: {}]
  %s4 = inlined_call_operand.vmem [shape: f32[1,32], index: 4, kind: input, shape index: {}]
  %s5 = inlined_call_operand.hbm [shape: f32[32,64], index: 5, kind: input, shape index: {}]
  %s6 = inlined_call_operand.vmem [shape: f32[1,64], index: 6, kind: input, shape index: {}]
  %s7 = inlined_call_operand.vmem [shape: f32[64,32], index: 7, kind: input, shape index: {}]
  %s8 = inlined_call_operand.vmem [shape: f32[1,32], index: 8, kind: input, shape index: {}]
  %s9 = inlined_call_operand.vmem [shape: f32[1,32], index: 9, kind: input, shape index: {}]
  %s10 = inlined_call_operand.vmem [shape: f32[1,32], index: 10, kind: input, shape index: {}]
  %s11 = inlined_call_operand.hbm [shape: f32[4,8,32], index: 11, kind: output, shape index: {}]
  %s12 = sld [smem:[#allocation0]]
  $region81: #{tpu_custom_call.1} parent=0
    _
  %s14 = ssub.s32 1, %s12
  %s15 = scalar_select 0, %s14, %s12
  $region1: #{tpu_custom_call.1} parent=0
    #allocation2 [shape = 'u8[16384]{0}', space=vmem, size = 0x4000, scoped, tag = 'input window, operand 5, single buffered']
    #allocation3 [shape = 's32[2]{0}', space=sflag, size = 0x8, scoped, tag = 'scoped memory for tpu_custom_call.1']
    #allocation4 [shape = 's32[2]{0}', space=sflag, size = 0x8, scoped, tag = 'scoped memory for tpu_custom_call.1']
    #allocation5 [shape = 'u8[16384]{0}', space=vmem, size = 0x4000, scoped, tag = 'output window, operand 0']
    %16 = vsyncpa [#allocation3], 0
    %17 = vsyncpa [#allocation4], 0
    %s18 = scalar_lea.sflag [#allocation4], 1
    %19 = vsyncpa %s18, 0
    loop: start=0, step=1, limit=4
    $region2: #{tpu_custom_call.1} parent=1 // loop_pre_header
      _
    $region3: #{tpu_custom_call.1} parent=1 // loop_header
      %s21 = sphi 0, %s25
      %p22 = scmp.ge.s32.totalorder %s21, 4
      %s31 = sphi 0, %s33
      %s34 = sphi 0, %s31
      %s35 = sphi 0, %s34
      %s51 = sphi 0, %s35
      %s55 = sphi 0, %s55
      %s57 = sphi 0, %s55
      %s58 = sphi 0, %s57
      %s72 = sphi 0, %s58
      %s76 = sphi 0, %s76
      %s78 = sphi 0, %s76
      %s79 = sphi 0, %s78
      %s93 = sphi 0, %s79
      %s97 = sphi 0, %s97
      %s99 = sphi 0, %s97
      %s100 = sphi 0, %s99
      %s114 = sphi 0, %s100
      %s118 = sphi 0, %s118
      %s120 = sphi 0, %s118
      %s121 = sphi 0, %s120
      %s135 = sphi 0, %s121
      %s139 = sphi 0, %s139
      %s141 = sphi 0, %s139
      %s142 = sphi 0, %s141
      %s156 = sphi 0, %s142
      %s160 = sphi 0, %s160
      %s162 = sphi 0, %s160
      %s163 = sphi 0, %s162
      %s177 = sphi 0, %s163
      %s181 = sphi 0, %s181
      %s183 = sphi 0, %s181
      %s184 = sphi 0, %s183
      %s198 = sphi 0, %s184
      %s202 = sphi 0, %s202
      %s204 = sphi 0, %s202
      %s205 = sphi 0, %s204
      %s219 = sphi 0, %s205
      %s223 = sphi 0, %s223
      %s225 = sphi 0, %s223
      %s226 = sphi 0, %s225
      %s240 = sphi 0, %s226
      %s244 = sphi 0, %s244
      %s246 = sphi 0, %s244
      %s247 = sphi 0, %s246
      %s261 = sphi 0, %s247
      %s267 = sphi 0, %s269
      %s270 = sphi 0, %s267
      %s271 = sphi 0, %s270
      %s287 = sphi 0, %s271
    $region4: #{tpu_custom_call.1} parent=1 // loop_header_branch
      %24 = sbr.rel (%p22) target = $region8
    $region5: #{tpu_custom_call.1} parent=1 // loop_body
      %s26 = ssub.s32 %s21, 1
      %s27 = ssub.s32 %s21, 2
      %s28 = sadd.s32 %s21, 1
      %s29 = ssub.s32 %s21, %s28
      %p30 = scmp.eq.s32.totalorder %s29, 0
      %s32 = sadd.s32 %s31, 1
      %s33 = scalar_select %p30, %s31, %s32
      %p36 = pneg %p30
      %p37 = scmp.eq.s32.totalorder %s21, 1
      %p38 = por %p36, %p37
      %p39 = scmp.ne.s32.totalorder %s31, %s34
      %p40 = scmp.eq.s32.totalorder %s21, 0
      %p41 = por %p39, %p40
      %p42 = scmp.ne.s32.totalorder %s31, %s34
      %p43 = scmp.eq.s32.totalorder %s26, 1
      %p44 = por %p42, %p43
      %p45 = scmp.ne.s32.totalorder %s34, %s35
      %p46 = scmp.eq.s32.totalorder %s26, 0
      %p47 = por %p45, %p46
      %p48 = scmp.ne.s32.totalorder %s34, %s35
      %p49 = scmp.eq.s32.totalorder %s27, 1
      %p50 = por %p48, %p49
      %p52 = scmp.ne.s32.totalorder %s35, %s51
      %p53 = scmp.eq.s32.totalorder %s27, 0
      %p54 = por %p52, %p53
      %s56 = sadd.s32 %s55, 1
      %p59 = scmp.eq.s32.totalorder %s21, 1
      %p60 = scmp.ne.s32.totalorder %s55, %s57
      %p61 = scmp.eq.s32.totalorder %s21, 0
      %p62 = por %p60, %p61
      %p63 = scmp.ne.s32.totalorder %s55, %s57
      %p64 = scmp.eq.s32.totalorder %s26, 1
      %p65 = por %p63, %p64
      %p66 = scmp.ne.s32.totalorder %s57, %s58
      %p67 = scmp.eq.s32.totalorder %s26, 0
      %p68 = por %p66, %p67
      %p69 = scmp.ne.s32.totalorder %s57, %s58
      %p70 = scmp.eq.s32.totalorder %s27, 1
      %p71 = por %p69, %p70
      %p73 = scmp.ne.s32.totalorder %s58, %s72
      %p74 = scmp.eq.s32.totalorder %s27, 0
      %p75 = por %p73, %p74
      %s77 = sadd.s32 %s76, 1
      %p80 = scmp.eq.s32.totalorder %s21, 1
      %p81 = scmp.ne.s32.totalorder %s76, %s78
      %p82 = scmp.eq.s32.totalorder %s21, 0
      %p83 = por %p81, %p82
      %p84 = scmp.ne.s32.totalorder %s76, %s78
      %p85 = scmp.eq.s32.totalorder %s26, 1
      %p86 = por %p84, %p85
      %p87 = scmp.ne.s32.totalorder %s78, %s79
      %p88 = scmp.eq.s32.totalorder %s26, 0
      %p89 = por %p87, %p88
      %p90 = scmp.ne.s32.totalorder %s78, %s79
      %p91 = scmp.eq.s32.totalorder %s27, 1
      %p92 = por %p90, %p91
      %p94 = scmp.ne.s32.totalorder %s79, %s93
      %p95 = scmp.eq.s32.totalorder %s27, 0
      %p96 = por %p94, %p95
      %s98 = sadd.s32 %s97, 1
      %p101 = scmp.eq.s32.totalorder %s21, 1
      %p102 = scmp.ne.s32.totalorder %s97, %s99
      %p103 = scmp.eq.s32.totalorder %s21, 0
      %p104 = por %p102, %p103
      %p105 = scmp.ne.s32.totalorder %s97, %s99
      %p106 = scmp.eq.s32.totalorder %s26, 1
      %p107 = por %p105, %p106
      %p108 = scmp.ne.s32.totalorder %s99, %s100
      %p109 = scmp.eq.s32.totalorder %s26, 0
      %p110 = por %p108, %p109
      %p111 = scmp.ne.s32.totalorder %s99, %s100
      %p112 = scmp.eq.s32.totalorder %s27, 1
      %p113 = por %p111, %p112
      %p115 = scmp.ne.s32.totalorder %s100, %s114
      %p116 = scmp.eq.s32.totalorder %s27, 0
      %p117 = por %p115, %p116
      %s119 = sadd.s32 %s118, 1
      %p122 = scmp.eq.s32.totalorder %s21, 1
      %p123 = scmp.ne.s32.totalorder %s118, %s120
      %p124 = scmp.eq.s32.totalorder %s21, 0
      %p125 = por %p123, %p124
      %p126 = scmp.ne.s32.totalorder %s118, %s120
      %p127 = scmp.eq.s32.totalorder %s26, 1
      %p128 = por %p126, %p127
      %p129 = scmp.ne.s32.totalorder %s120, %s121
      %p130 = scmp.eq.s32.totalorder %s26, 0
      %p131 = por %p129, %p130
      %p132 = scmp.ne.s32.totalorder %s120, %s121
      %p133 = scmp.eq.s32.totalorder %s27, 1
      %p134 = por %p132, %p133
      %p136 = scmp.ne.s32.totalorder %s121, %s135
      %p137 = scmp.eq.s32.totalorder %s27, 0
      %p138 = por %p136, %p137
      %s140 = sadd.s32 %s139, 1
      %p143 = scmp.eq.s32.totalorder %s21, 1
      %p144 = scmp.ne.s32.totalorder %s139, %s141
      %p145 = scmp.eq.s32.totalorder %s21, 0
      %p146 = por %p144, %p145
      %p147 = scmp.ne.s32.totalorder %s139, %s141
      %p148 = scmp.eq.s32.totalorder %s26, 1
      %p149 = por %p147, %p148
      %p150 = scmp.ne.s32.totalorder %s141, %s142
      %p151 = scmp.eq.s32.totalorder %s26, 0
      %p152 = por %p150, %p151
      %p153 = scmp.ne.s32.totalorder %s141, %s142
      %p154 = scmp.eq.s32.totalorder %s27, 1
      %p155 = por %p153, %p154
      %p157 = scmp.ne.s32.totalorder %s142, %s156
      %p158 = scmp.eq.s32.totalorder %s27, 0
      %p159 = por %p157, %p158
      %s161 = sadd.s32 %s160, 1
      %p164 = scmp.eq.s32.totalorder %s21, 1
      %p165 = scmp.ne.s32.totalorder %s160, %s162
      %p166 = scmp.eq.s32.totalorder %s21, 0
      %p167 = por %p165, %p166
      %p168 = scmp.ne.s32.totalorder %s160, %s162
      %p169 = scmp.eq.s32.totalorder %s26, 1
      %p170 = por %p168, %p169
      %p171 = scmp.ne.s32.totalorder %s162, %s163
      %p172 = scmp.eq.s32.totalorder %s26, 0
      %p173 = por %p171, %p172
      %p174 = scmp.ne.s32.totalorder %s162, %s163
      %p175 = scmp.eq.s32.totalorder %s27, 1
      %p176 = por %p174, %p175
      %p178 = scmp.ne.s32.totalorder %s163, %s177
      %p179 = scmp.eq.s32.totalorder %s27, 0
      %p180 = por %p178, %p179
      %s182 = sadd.s32 %s181, 1
      %p185 = scmp.eq.s32.totalorder %s21, 1
      %p186 = scmp.ne.s32.totalorder %s181, %s183
      %p187 = scmp.eq.s32.totalorder %s21, 0
      %p188 = por %p186, %p187
      %p189 = scmp.ne.s32.totalorder %s181, %s183
      %p190 = scmp.eq.s32.totalorder %s26, 1
      %p191 = por %p189, %p190
      %p192 = scmp.ne.s32.totalorder %s183, %s184
      %p193 = scmp.eq.s32.totalorder %s26, 0
      %p194 = por %p192, %p193
      %p195 = scmp.ne.s32.totalorder %s183, %s184
      %p196 = scmp.eq.s32.totalorder %s27, 1
      %p197 = por %p195, %p196
      %p199 = scmp.ne.s32.totalorder %s184, %s198
      %p200 = scmp.eq.s32.totalorder %s27, 0
      %p201 = por %p199, %p200
      %s203 = sadd.s32 %s202, 1
      %p206 = scmp.eq.s32.totalorder %s21, 1
      %p207 = scmp.ne.s32.totalorder %s202, %s204
      %p208 = scmp.eq.s32.totalorder %s21, 0
      %p209 = por %p207, %p208
      %p210 = scmp.ne.s32.totalorder %s202, %s204
      %p211 = scmp.eq.s32.totalorder %s26, 1
      %p212 = por %p210, %p211
      %p213 = scmp.ne.s32.totalorder %s204, %s205
      %p214 = scmp.eq.s32.totalorder %s26, 0
      %p215 = por %p213, %p214
      %p216 = scmp.ne.s32.totalorder %s204, %s205
      %p217 = scmp.eq.s32.totalorder %s27, 1
      %p218 = por %p216, %p217
      %p220 = scmp.ne.s32.totalorder %s205, %s219
      %p221 = scmp.eq.s32.totalorder %s27, 0
      %p222 = por %p220, %p221
      %s224 = sadd.s32 %s223, 1
      %p227 = scmp.eq.s32.totalorder %s21, 1
      %p228 = scmp.ne.s32.totalorder %s223, %s225
      %p229 = scmp.eq.s32.totalorder %s21, 0
      %p230 = por %p228, %p229
      %p231 = scmp.ne.s32.totalorder %s223, %s225
      %p232 = scmp.eq.s32.totalorder %s26, 1
      %p233 = por %p231, %p232
      %p234 = scmp.ne.s32.totalorder %s225, %s226
      %p235 = scmp.eq.s32.totalorder %s26, 0
      %p236 = por %p234, %p235
      %p237 = scmp.ne.s32.totalorder %s225, %s226
      %p238 = scmp.eq.s32.totalorder %s27, 1
      %p239 = por %p237, %p238
      %p241 = scmp.ne.s32.totalorder %s226, %s240
      %p242 = scmp.eq.s32.totalorder %s27, 0
      %p243 = por %p241, %p242
      %s245 = sadd.s32 %s244, 1
      %p248 = scmp.eq.s32.totalorder %s21, 1
      %p249 = scmp.ne.s32.totalorder %s244, %s246
      %p250 = scmp.eq.s32.totalorder %s21, 0
      %p251 = por %p249, %p250
      %p252 = scmp.ne.s32.totalorder %s244, %s246
      %p253 = scmp.eq.s32.totalorder %s26, 1
      %p254 = por %p252, %p253
      %p255 = scmp.ne.s32.totalorder %s246, %s247
      %p256 = scmp.eq.s32.totalorder %s26, 0
      %p257 = por %p255, %p256
      %p258 = scmp.ne.s32.totalorder %s246, %s247
      %p259 = scmp.eq.s32.totalorder %s27, 1
      %p260 = por %p258, %p259
      %p262 = scmp.ne.s32.totalorder %s247, %s261
      %p263 = scmp.eq.s32.totalorder %s27, 0
      %p264 = por %p262, %p263
      %s265 = ssub.s32 %s21, %s28
      %p266 = scmp.eq.s32.totalorder %s265, 0
      %s268 = sadd.s32 %s267, 1
      %s269 = scalar_select %p266, %s267, %s268
      %p272 = pneg %p266
      %p273 = scmp.eq.s32.totalorder %s21, 1
      %p274 = por %p272, %p273
      %p275 = scmp.ne.s32.totalorder %s267, %s270
      %p276 = scmp.eq.s32.totalorder %s21, 0
      %p277 = por %p275, %p276
      %p278 = scmp.ne.s32.totalorder %s267, %s270
      %p279 = scmp.eq.s32.totalorder %s26, 1
      %p280 = por %p278, %p279
      %p281 = scmp.ne.s32.totalorder %s270, %s271
      %p282 = scmp.eq.s32.totalorder %s26, 0
      %p283 = por %p281, %p282
      %p284 = scmp.ne.s32.totalorder %s270, %s271
      %p285 = scmp.eq.s32.totalorder %s27, 1
      %p286 = por %p284, %p285
      %p288 = scmp.ne.s32.totalorder %s271, %s287
      %p289 = scmp.eq.s32.totalorder %s27, 0
      %p290 = por %p288, %p289
      %p291 = scmp.le.s32.totalorder 1, %s21
      %p292 = scmp.lt.s32.totalorder %s21, 3
      %p293 = pnand %p291, %p292
      %p294 = pneg %p293
      // Predicated region
      $region9: #{tpu_custom_call.1} parent=5 // pred_check
        _
      $region10: #{tpu_custom_call.1} parent=5 // pred_check_branch
        %296 = sbr.rel (%p293) target = $region12
      $region11: #{tpu_custom_call.1} parent=5 // pred_region
        %s297 = ssub.s32 %s21, 1
        // Predicated region
        $region13: #{tpu_custom_call.1} parent=11 // pred_check
          %p298 = pneg %p68
        $region14: #{tpu_custom_call.1} parent=11 // pred_check_branch
          %300 = sbr.rel (%p298) target = $region16
        $region15: #{tpu_custom_call.1} parent=11 // pred_region
          _
        $region16: #{tpu_custom_call.1} parent=11 // pred_fallthru
          _
        // Predicated region
        $region17: #{tpu_custom_call.1} parent=11 // pred_check
          %p301 = pneg %p89
        $region18: #{tpu_custom_call.1} parent=11 // pred_check_branch
          %303 = sbr.rel (%p301) target = $region20
        $region19: #{tpu_custom_call.1} parent=11 // pred_region
          _
        $region20: #{tpu_custom_call.1} parent=11 // pred_fallthru
          _
        // Predicated region
        $region21: #{tpu_custom_call.1} parent=11 // pred_check
          %p304 = pneg %p110
        $region22: #{tpu_custom_call.1} parent=11 // pred_check_branch
          %306 = sbr.rel (%p304) target = $region24
        $region23: #{tpu_custom_call.1} parent=11 // pred_region
          _
        $region24: #{tpu_custom_call.1} parent=11 // pred_fallthru
          _
        // Predicated region
        $region25: #{tpu_custom_call.1} parent=11 // pred_check
          %p307 = pneg %p131
        $region26: #{tpu_custom_call.1} parent=11 // pred_check_branch
          %309 = sbr.rel (%p307) target = $region28
        $region27: #{tpu_custom_call.1} parent=11 // pred_region
          _
        $region28: #{tpu_custom_call.1} parent=11 // pred_fallthru
          _
        // Predicated region
        $region29: #{tpu_custom_call.1} parent=11 // pred_check
          %p310 = pneg %p152
        $region30: #{tpu_custom_call.1} parent=11 // pred_check_branch
          %312 = sbr.rel (%p310) target = $region32
        $region31: #{tpu_custom_call.1} parent=11 // pred_region
          %s314 = ssub.s32 512, 512
          %315 = vsyncadd [#allocation3], %s314
          %s316 = sshll.u32 [#allocation2], 4
          %s317 = int_to_ptr.vmem [resolvable:$true] %s316
          %322 = dma.hbm_to_vmem [thread:$0]  %s5, 512, %s317, [#allocation3], 128, 128, 8
        $region32: #{tpu_custom_call.1} parent=11 // pred_fallthru
          _
        // Predicated region
        $region33: #{tpu_custom_call.1} parent=11 // pred_check
          %p323 = pneg %p173
        $region34: #{tpu_custom_call.1} parent=11 // pred_check_branch
          %325 = sbr.rel (%p323) target = $region36
        $region35: #{tpu_custom_call.1} parent=11 // pred_region
          _
        $region36: #{tpu_custom_call.1} parent=11 // pred_fallthru
          _
        // Predicated region
        $region37: #{tpu_custom_call.1} parent=11 // pred_check
          %p326 = pneg %p194
        $region38: #{tpu_custom_call.1} parent=11 // pred_check_branch
          %328 = sbr.rel (%p326) target = $region40
        $region39: #{tpu_custom_call.1} parent=11 // pred_region
          _
        $region40: #{tpu_custom_call.1} parent=11 // pred_fallthru
          _
        // Predicated region
        $region41: #{tpu_custom_call.1} parent=11 // pred_check
          %p329 = pneg %p215
        $region42: #{tpu_custom_call.1} parent=11 // pred_check_branch
          %331 = sbr.rel (%p329) target = $region44
        $region43: #{tpu_custom_call.1} parent=11 // pred_region
          _
        $region44: #{tpu_custom_call.1} parent=11 // pred_fallthru
          _
        // Predicated region
        $region45: #{tpu_custom_call.1} parent=11 // pred_check
          %p332 = pneg %p236
        $region46: #{tpu_custom_call.1} parent=11 // pred_check_branch
          %334 = sbr.rel (%p332) target = $region48
        $region47: #{tpu_custom_call.1} parent=11 // pred_region
          _
        $region48: #{tpu_custom_call.1} parent=11 // pred_fallthru
          _
        // Predicated region
        $region49: #{tpu_custom_call.1} parent=11 // pred_check
          %p335 = pneg %p257
        $region50: #{tpu_custom_call.1} parent=11 // pred_check_branch
          %337 = sbr.rel (%p335) target = $region52
        $region51: #{tpu_custom_call.1} parent=11 // pred_region
          _
        $region52: #{tpu_custom_call.1} parent=11 // pred_fallthru
          _
      $region12: #{tpu_custom_call.1} parent=5 // pred_fallthru
        _
      %p338 = scmp.lt.s32.totalorder %s21, 2
      // Predicated region
      $region53: #{tpu_custom_call.1} parent=5 // pred_check
        %p339 = pneg %p338
      $region54: #{tpu_custom_call.1} parent=5 // pred_check_branch
        %341 = sbr.rel (%p339) target = $region56
      $region55: #{tpu_custom_call.1} parent=5 // pred_region
        // Predicated region
        $region57: #{tpu_custom_call.1} parent=55 // pred_check
          %p342 = pneg %p41
        $region58: #{tpu_custom_call.1} parent=55 // pred_check_branch
          %344 = sbr.rel (%p342) target = $region60
        $region59: #{tpu_custom_call.1} parent=55 // pred_region
          %s345 = smul.u32 2, %s21
          %p346 = scmp.lt.s32.totalorder %s345, 3
          %s347 = scalar_select %p346, %s345, 3
          %s348 = smul.addr %s347, 8
          %s349 = scalar_lea.vmem %s0, %s348
          %s350 = smul.u32 2, %s21
        $region60: #{tpu_custom_call.1} parent=55 // pred_fallthru
          _
      $region56: #{tpu_custom_call.1} parent=5 // pred_fallthru
        _
      %p351 = scmp.le.s32.totalorder 1, %s21
      %p352 = scmp.lt.s32.totalorder %s21, 3
      %p353 = pnand %p351, %p352
      %p354 = pneg %p353
      // Predicated region
      $region61: #{tpu_custom_call.1} parent=5 // pred_check
        _
      $region62: #{tpu_custom_call.1} parent=5 // pred_check_branch
        %356 = sbr.rel (%p353) target = $region64
      $region63: #{tpu_custom_call.1} parent=5 // pred_region
        %s357 = ssub.s32 %s21, 1
        // Predicated region
        $region65: #{tpu_custom_call.1} parent=63 // pred_check
          %p358 = pneg %p152
        $region66: #{tpu_custom_call.1} parent=63 // pred_check_branch
          %360 = sbr.rel (%p358) target = $region68
        $region67: #{tpu_custom_call.1} parent=63 // pred_region
          %361 = dma.done [#allocation3], 512
        $region68: #{tpu_custom_call.1} parent=63 // pred_fallthru
          _
        %s362 = smul.u32 2, %s26
        %p363 = scmp.lt.s32.totalorder %s362, 3
        %s364 = scalar_select %p363, %s362, 3
        %s365 = smul.addr %s364, 8
        %s366 = scalar_lea.vmem %s0, %s365
        %p367 = pneg %p47
        %p368 = pneg %p44
        %p369 = pneg %p68
        %p370 = pneg %p65
        %p371 = pneg %p89
        %p372 = pneg %p86
        %p373 = pneg %p110
        %p374 = pneg %p107
        %p375 = pneg %p131
        %p376 = pneg %p128
        %p377 = pneg %p152
        %p378 = pneg %p149
        %p379 = pneg %p173
        %p380 = pneg %p170
        %p381 = pneg %p194
        %p382 = pneg %p191
        %p383 = pneg %p215
        %p384 = pneg %p212
        %p385 = pneg %p236
        %p386 = pneg %p233
        %p387 = pneg %p257
        %p388 = pneg %p254
        %p389 = pneg %p283
        %p390 = pneg %p280
        %s391 = sand.u32 %s270, 1
        %s392 = scalar_lea.sflag [#allocation4], %s391
        %s393 = sand.u32 %s270, 1
        %s394 = smul.addr %s393, 16
        %s395 = scalar_lea.vmem [#allocation5], %s394
        %s396 = smul.u32 2, %s26
        %p397 = scmp.lt.s32.totalorder %s396, 3
        %s398 = scalar_select %p397, %s396, 3
        %s399 = smul.addr %s398, 8
        %s400 = scalar_lea.vmem %s0, %s399
        %s401 = smul.u32 2, %s26
        %s402 = smul.u32 2, %s26
        %v403 = vld [vmem:[%s400] sm:$0xff]
        %v404 = vld [vmem:[%s400 + $0x8] sm:$0xff]
        %v405 = vld [vmem:[%s1] sm:$0xff]
        %v406 = vld [vmem:[%s1 + $0x8] sm:$0xff]
        %v407 = vld [vmem:[%s1 + $0x10] sm:$0xff]
        %v408 = vld [vmem:[%s1 + $0x18] sm:$0xff]
        %vm409 = vcmask 261120
        %v411 = vsel %vm409, %v403, 0
        %v414 = vsel %vm409, %v404, 0
        %416 = vmatprep.subr.mxu0 0.0
        %417 = vmatpush1.msra.mxu0 %v405
        %418 = vmatprep.subr.mxu0 0.0
        %419 = vmatpush1.msra.mxu0 %v406
        %420 = vmatprep.subr.mxu0 0.0
        %421 = vmatpush1.msra.mxu0 %v407
        %422 = vmatprep.subr.mxu0 0.0
        %423 = vmatpush1.msra.mxu0 %v408
        %424 = vmatprep.subr.mxu0 0.0
        %425 = vmatpush1.msra.mxu0 0.0
        %426 = vmatprep.subr.mxu0 0.0
        %427 = vmatpush1.msra.mxu0 0.0
        %428 = vmatprep.subr.mxu0 0.0
        %429 = vmatpush1.msra.mxu0 0.0
        %430 = vmatprep.subr.mxu0 0.0
        %431 = vmatpush1.msra.mxu0 0.0
        %432 = vmatprep.subr.mxu0 0.0
        %433 = vmatpush1.msra.mxu0 0.0
        %434 = vmatprep.subr.mxu0 0.0
        %435 = vmatpush1.msra.mxu0 0.0
        %436 = vmatprep.subr.mxu0 0.0
        %437 = vmatpush1.msra.mxu0 0.0
        %438 = vmatprep.subr.mxu0 0.0
        %439 = vmatpush1.msra.mxu0 0.0
        %440 = vmatprep.subr.mxu0 0.0
        %441 = vmatpush1.msra.mxu0 0.0
        %442 = vmatprep.subr.mxu0 0.0
        %443 = vmatpush1.msra.mxu0 0.0
        %444 = vmatprep.subr.mxu0 0.0
        %445 = vmatpush1.msra.mxu0 0.0
        %446 = vmatprep.subr.mxu0 0.0
        %447 = vmatpush1.msra.mxu0 0.0
        %448 = vmatprep.subr.mxu0 0.0
        %449 = vmatpush1.msra.mxu0 0.0
        %450 = vmatprep.subr.mxu0 0.0
        %451 = vmatpush1.msra.mxu0 0.0
        %452 = vmatprep.subr.mxu0 0.0
        %453 = vmatpush1.msra.mxu0 0.0
        %454 = vmatprep.subr.mxu0 0.0
        %455 = vmatpush1.msra.mxu0 0.0
        %456 = vmatprep.subr.mxu0 0.0
        %457 = vmatpush1.msra.mxu0 0.0
        %458 = vmatprep.subr.mxu0 0.0
        %459 = vmatpush1.msra.mxu0 0.0
        %460 = vmatprep.subr.mxu0 0.0
        %461 = vmatpush1.msra.mxu0 0.0
        %462 = vmatprep.subr.mxu0 0.0
        %463 = vmatpush1.msra.mxu0 0.0
        %464 = vmatprep.subr.mxu0 0.0
        %465 = vmatpush1.msra.mxu0 0.0
        %466 = vmatprep.subr.mxu0 0.0
        %467 = vmatpush1.msra.mxu0 0.0
        %468 = vmatprep.subr.mxu0 0.0
        %469 = vmatpush1.msra.mxu0 0.0
        %470 = vmatprep.subr.mxu0 0.0
        %471 = vmatpush1.msra.mxu0 0.0
        %472 = vmatprep.subr.mxu0 0.0
        %473 = vmatpush1.msra.mxu0 0.0
        %474 = vmatprep.subr.mxu0 0.0
        %475 = vmatpush1.msra.mxu0 0.0
        %476 = vmatprep.subr.mxu0 0.0
        %477 = vmatpush1.msra.mxu0 0.0
        %478 = vmatprep.subr.mxu0 0.0
        %479 = vmatpush1.msra.mxu0 0.0
        %480 = vmatprep.mubr.f32.mxu0 0.0
        %481 = vmatmul.mubr.f32.gmra.mrb[0].mxu0 %v411
        %v482 = vpop.f32.mrb[0].mxu0
        %v483 = vadd.f32 0.0, %v482
        %v484 = vpop.f32.mrb[0].mxu0
        %485 = vmatprep.mubr.f32.mxu0 0.0
        %486 = vmatmul.mubr.f32.gmra.mrb[0].mxu0 %v414
        %v487 = vpop.f32.mrb[0].mxu0
        %v488 = vadd.f32 0.0, %v487
        %v489 = vpop.f32.mrb[0].mxu0
        %490 = vdwg.mxu0
        %492 = vrot.lane.b32.xlu0 %v483, 96
        %v493 = vpop.permute.xlu0 %492
        %vm494 = vcmask 64512
        %v495 = vsel %vm494, %v483, 0
        %v497 = vsel %vm494, %v493, 0
        %499 = vmatprep.subr.mxu0 0.0
        %500 = vmatpush1.xpose.msra.mxu0 %v497
        %501 = vmatprep.subr.mxu0 0.0
        %502 = vmatpush1.xpose.msra.mxu0 0.0
        %503 = vmatprep.subr.mxu0 0.0
        %504 = vmatpush1.xpose.msra.mxu0 0.0
        %505 = vmatprep.subr.mxu0 0.0
        %506 = vmatpush1.xpose.msra.mxu0 0.0
        %507 = vmatprep.subr.mxu0 0.0
        %508 = vmatpush1.xpose.msra.mxu0 0.0
        %509 = vmatprep.subr.mxu0 0.0
        %510 = vmatpush1.xpose.msra.mxu0 0.0
        %511 = vmatprep.subr.mxu0 0.0
        %512 = vmatpush1.xpose.msra.mxu0 0.0
        %513 = vmatprep.subr.mxu0 0.0
        %514 = vmatpush1.xpose.msra.mxu0 0.0
        %515 = vmatprep.subr.mxu0 0.0
        %516 = vmatpush1.xpose.msra.mxu0 0.0
        %517 = vmatprep.subr.mxu0 0.0
        %518 = vmatpush1.xpose.msra.mxu0 0.0
        %519 = vmatprep.subr.mxu0 0.0
        %520 = vmatpush1.xpose.msra.mxu0 0.0
        %521 = vmatprep.subr.mxu0 0.0
        %522 = vmatpush1.xpose.msra.mxu0 0.0
        %523 = vmatprep.subr.mxu0 0.0
        %524 = vmatpush1.xpose.msra.mxu0 0.0
        %525 = vmatprep.subr.mxu0 0.0
        %526 = vmatpush1.xpose.msra.mxu0 0.0
        %527 = vmatprep.subr.mxu0 0.0
        %528 = vmatpush1.xpose.msra.mxu0 0.0
        %529 = vmatprep.subr.mxu0 0.0
        %530 = vmatpush1.xpose.msra.mxu0 0.0
        %531 = vmatprep.subr.mxu0 0.0
        %532 = vmatpush1.xpose.msra.mxu0 0.0
        %533 = vmatprep.subr.mxu0 0.0
        %534 = vmatpush1.xpose.msra.mxu0 0.0
        %535 = vmatprep.subr.mxu0 0.0
        %536 = vmatpush1.xpose.msra.mxu0 0.0
        %537 = vmatprep.subr.mxu0 0.0
        %538 = vmatpush1.xpose.msra.mxu0 0.0
        %539 = vmatprep.subr.mxu0 0.0
        %540 = vmatpush1.xpose.msra.mxu0 0.0
        %541 = vmatprep.subr.mxu0 0.0
        %542 = vmatpush1.xpose.msra.mxu0 0.0
        %543 = vmatprep.subr.mxu0 0.0
        %544 = vmatpush1.xpose.msra.mxu0 0.0
        %545 = vmatprep.subr.mxu0 0.0
        %546 = vmatpush1.xpose.msra.mxu0 0.0
        %547 = vmatprep.subr.mxu0 0.0
        %548 = vmatpush1.xpose.msra.mxu0 0.0
        %549 = vmatprep.subr.mxu0 0.0
        %550 = vmatpush1.xpose.msra.mxu0 0.0
        %551 = vmatprep.subr.mxu0 0.0
        %552 = vmatpush1.xpose.msra.mxu0 0.0
        %553 = vmatprep.subr.mxu0 0.0
        %554 = vmatpush1.xpose.msra.mxu0 0.0
        %555 = vmatprep.subr.mxu0 0.0
        %556 = vmatpush1.xpose.msra.mxu0 0.0
        %557 = vmatprep.subr.mxu0 0.0
        %558 = vmatpush1.xpose.msra.mxu0 0.0
        %559 = vmatprep.subr.mxu0 0.0
        %560 = vmatpush1.xpose.msra.mxu0 0.0
        %561 = vmatprep.subr.mxu0 0.0
        %562 = vmatpush1.xpose.msra.mxu0 0.0
        %563 = vmatprep.mubr.f32.mxu0 0.0
        %564 = vmatmul.mubr.f32.gmra.mrb[0].mxu0 %v495
        %v565 = vpop.f32.mrb[0].mxu0
        %v566 = vadd.f32 0.0, %v565
        %v567 = vpop.f32.mrb[0].mxu0
        %568 = vdwg.mxu0
        %570 = vrot.lane.b32.xlu0 %v488, 96
        %v571 = vpop.permute.xlu0 %570
        %v572 = vsel %vm494, %v488, 0
        %v574 = vsel %vm494, %v571, 0
        %576 = vmatprep.subr.mxu0 0.0
        %577 = vmatpush1.xpose.msra.mxu0 %v574
        %578 = vmatprep.subr.mxu0 0.0
        %579 = vmatpush1.xpose.msra.mxu0 0.0
        %580 = vmatprep.subr.mxu0 0.0
        %581 = vmatpush1.xpose.msra.mxu0 0.0
        %582 = vmatprep.subr.mxu0 0.0
        %583 = vmatpush1.xpose.msra.mxu0 0.0
        %584 = vmatprep.subr.mxu0 0.0
        %585 = vmatpush1.xpose.msra.mxu0 0.0
        %586 = vmatprep.subr.mxu0 0.0
        %587 = vmatpush1.xpose.msra.mxu0 0.0
        %588 = vmatprep.subr.mxu0 0.0
        %589 = vmatpush1.xpose.msra.mxu0 0.0
        %590 = vmatprep.subr.mxu0 0.0
        %591 = vmatpush1.xpose.msra.mxu0 0.0
        %592 = vmatprep.subr.mxu0 0.0
        %593 = vmatpush1.xpose.msra.mxu0 0.0
        %594 = vmatprep.subr.mxu0 0.0
        %595 = vmatpush1.xpose.msra.mxu0 0.0
        %596 = vmatprep.subr.mxu0 0.0
        %597 = vmatpush1.xpose.msra.mxu0 0.0
        %598 = vmatprep.subr.mxu0 0.0
        %599 = vmatpush1.xpose.msra.mxu0 0.0
        %600 = vmatprep.subr.mxu0 0.0
        %601 = vmatpush1.xpose.msra.mxu0 0.0
        %602 = vmatprep.subr.mxu0 0.0
        %603 = vmatpush1.xpose.msra.mxu0 0.0
        %604 = vmatprep.subr.mxu0 0.0
        %605 = vmatpush1.xpose.msra.mxu0 0.0
        %606 = vmatprep.subr.mxu0 0.0
        %607 = vmatpush1.xpose.msra.mxu0 0.0
        %608 = vmatprep.subr.mxu0 0.0
        %609 = vmatpush1.xpose.msra.mxu0 0.0
        %610 = vmatprep.subr.mxu0 0.0
        %611 = vmatpush1.xpose.msra.mxu0 0.0
        %612 = vmatprep.subr.mxu0 0.0
        %613 = vmatpush1.xpose.msra.mxu0 0.0
        %614 = vmatprep.subr.mxu0 0.0
        %615 = vmatpush1.xpose.msra.mxu0 0.0
        %616 = vmatprep.subr.mxu0 0.0
        %617 = vmatpush1.xpose.msra.mxu0 0.0
        %618 = vmatprep.subr.mxu0 0.0
        %619 = vmatpush1.xpose.msra.mxu0 0.0
        %620 = vmatprep.subr.mxu0 0.0
        %621 = vmatpush1.xpose.msra.mxu0 0.0
        %622 = vmatprep.subr.mxu0 0.0
        %623 = vmatpush1.xpose.msra.mxu0 0.0
        %624 = vmatprep.subr.mxu0 0.0
        %625 = vmatpush1.xpose.msra.mxu0 0.0
        %626 = vmatprep.subr.mxu0 0.0
        %627 = vmatpush1.xpose.msra.mxu0 0.0
        %628 = vmatprep.subr.mxu0 0.0
        %629 = vmatpush1.xpose.msra.mxu0 0.0
        %630 = vmatprep.subr.mxu0 0.0
        %631 = vmatpush1.xpose.msra.mxu0 0.0
        %632 = vmatprep.subr.mxu0 0.0
        %633 = vmatpush1.xpose.msra.mxu0 0.0
        %634 = vmatprep.subr.mxu0 0.0
        %635 = vmatpush1.xpose.msra.mxu0 0.0
        %636 = vmatprep.subr.mxu0 0.0
        %637 = vmatpush1.xpose.msra.mxu0 0.0
        %638 = vmatprep.subr.mxu0 0.0
        %639 = vmatpush1.xpose.msra.mxu0 0.0
        %640 = vmatprep.mubr.f32.mxu0 0.0
        %641 = vmatmul.mubr.f32.gmra.mrb[0].mxu0 %v572
        %v642 = vpop.f32.mrb[0].mxu0
        %v643 = vadd.f32 0.0, %v642
        %v644 = vpop.f32.mrb[0].mxu0
        %645 = vdwg.mxu0
        %v646 = vsel %vm494, %v566, -inf
        %647 = vmax.xlane.f32.xlu0 %v646
        %v648 = vpop.xlane.xlu0 %647
        %v649 = vsel %vm494, %v643, -inf
        %650 = vmax.xlane.f32.xlu0 %v649
        %v651 = vpop.xlane.xlu0 %650
        %v652 = vsub.f32 %v566, %v648
        %v653 = vsub.f32 %v643, %v651
        %v654 = vmul.f32 %v652, 1.442695
        %v655 = vpow.pop %v654
        %v656 = vmul.f32 %v653, 1.442695
        %v657 = vpow.pop %v656
        %v658 = vsel %vm494, %v655, 0.0
        %659 = vadd.xlane.f32.xlu0 %v658
        %v660 = vpop.xlane.xlu0 %659
        %v661 = vsel %vm494, %v657, 0.0
        %662 = vadd.xlane.f32.xlu0 %v661
        %v663 = vpop.xlane.xlu0 %662
        %v664 = vrcp.pop %v660
        %v665 = vrcp.pop %v663
        %v666 = vmul.f32 %v655, %v664
        %v667 = vmul.f32 %v657, %v665
        %668 = vrot.lane.b32.xlu0 %v483, 64
        %v669 = vpop.permute.xlu0 %668
        %v672 = vsel %vm494, %v666, 0
        %674 = vmatprep.subr.mxu0 0.0
        %675 = vmatpush1.msra.mxu0 %v669
        %676 = vmatprep.subr.mxu0 0.0
        %677 = vmatpush1.msra.mxu0 0.0
        %678 = vmatprep.subr.mxu0 0.0
        %679 = vmatpush1.msra.mxu0 0.0
        %680 = vmatprep.subr.mxu0 0.0
        %681 = vmatpush1.msra.mxu0 0.0
        %682 = vmatprep.subr.mxu0 0.0
        %683 = vmatpush1.msra.mxu0 0.0
        %684 = vmatprep.subr.mxu0 0.0
        %685 = vmatpush1.msra.mxu0 0.0
        %686 = vmatprep.subr.mxu0 0.0
        %687 = vmatpush1.msra.mxu0 0.0
        %688 = vmatprep.subr.mxu0 0.0
        %689 = vmatpush1.msra.mxu0 0.0
        %690 = vmatprep.subr.mxu0 0.0
        %691 = vmatpush1.msra.mxu0 0.0
        %692 = vmatprep.subr.mxu0 0.0
        %693 = vmatpush1.msra.mxu0 0.0
        %694 = vmatprep.subr.mxu0 0.0
        %695 = vmatpush1.msra.mxu0 0.0
        %696 = vmatprep.subr.mxu0 0.0
        %697 = vmatpush1.msra.mxu0 0.0
        %698 = vmatprep.subr.mxu0 0.0
        %699 = vmatpush1.msra.mxu0 0.0
        %700 = vmatprep.subr.mxu0 0.0
        %701 = vmatpush1.msra.mxu0 0.0
        %702 = vmatprep.subr.mxu0 0.0
        %703 = vmatpush1.msra.mxu0 0.0
        %704 = vmatprep.subr.mxu0 0.0
        %705 = vmatpush1.msra.mxu0 0.0
        %706 = vmatprep.subr.mxu0 0.0
        %707 = vmatpush1.msra.mxu0 0.0
        %708 = vmatprep.subr.mxu0 0.0
        %709 = vmatpush1.msra.mxu0 0.0
        %710 = vmatprep.subr.mxu0 0.0
        %711 = vmatpush1.msra.mxu0 0.0
        %712 = vmatprep.subr.mxu0 0.0
        %713 = vmatpush1.msra.mxu0 0.0
        %714 = vmatprep.subr.mxu0 0.0
        %715 = vmatpush1.msra.mxu0 0.0
        %716 = vmatprep.subr.mxu0 0.0
        %717 = vmatpush1.msra.mxu0 0.0
        %718 = vmatprep.subr.mxu0 0.0
        %719 = vmatpush1.msra.mxu0 0.0
        %720 = vmatprep.subr.mxu0 0.0
        %721 = vmatpush1.msra.mxu0 0.0
        %722 = vmatprep.subr.mxu0 0.0
        %723 = vmatpush1.msra.mxu0 0.0
        %724 = vmatprep.subr.mxu0 0.0
        %725 = vmatpush1.msra.mxu0 0.0
        %726 = vmatprep.subr.mxu0 0.0
        %727 = vmatpush1.msra.mxu0 0.0
        %728 = vmatprep.subr.mxu0 0.0
        %729 = vmatpush1.msra.mxu0 0.0
        %730 = vmatprep.subr.mxu0 0.0
        %731 = vmatpush1.msra.mxu0 0.0
        %732 = vmatprep.subr.mxu0 0.0
        %733 = vmatpush1.msra.mxu0 0.0
        %734 = vmatprep.subr.mxu0 0.0
        %735 = vmatpush1.msra.mxu0 0.0
        %736 = vmatprep.subr.mxu0 0.0
        %737 = vmatpush1.msra.mxu0 0.0
        %738 = vmatprep.mubr.f32.mxu0 0.0
        %739 = vmatmul.mubr.f32.gmra.mrb[0].mxu0 %v672
        %v740 = vpop.f32.mrb[0].mxu0
        %v741 = vadd.f32 0.0, %v740
        %v742 = vpop.f32.mrb[0].mxu0
        %743 = vdwg.mxu0
        %744 = vrot.lane.b32.xlu0 %v488, 64
        %v745 = vpop.permute.xlu0 %744
        %v748 = vsel %vm494, %v667, 0
        %750 = vmatprep.subr.mxu0 0.0
        %751 = vmatpush1.msra.mxu0 %v745
        %752 = vmatprep.subr.mxu0 0.0
        %753 = vmatpush1.msra.mxu0 0.0
        %754 = vmatprep.subr.mxu0 0.0
        %755 = vmatpush1.msra.mxu0 0.0
        %756 = vmatprep.subr.mxu0 0.0
        %757 = vmatpush1.msra.mxu0 0.0
        %758 = vmatprep.subr.mxu0 0.0
        %759 = vmatpush1.msra.mxu0 0.0
        %760 = vmatprep.subr.mxu0 0.0
        %761 = vmatpush1.msra.mxu0 0.0
        %762 = vmatprep.subr.mxu0 0.0
        %763 = vmatpush1.msra.mxu0 0.0
        %764 = vmatprep.subr.mxu0 0.0
        %765 = vmatpush1.msra.mxu0 0.0
        %766 = vmatprep.subr.mxu0 0.0
        %767 = vmatpush1.msra.mxu0 0.0
        %768 = vmatprep.subr.mxu0 0.0
        %769 = vmatpush1.msra.mxu0 0.0
        %770 = vmatprep.subr.mxu0 0.0
        %771 = vmatpush1.msra.mxu0 0.0
        %772 = vmatprep.subr.mxu0 0.0
        %773 = vmatpush1.msra.mxu0 0.0
        %774 = vmatprep.subr.mxu0 0.0
        %775 = vmatpush1.msra.mxu0 0.0
        %776 = vmatprep.subr.mxu0 0.0
        %777 = vmatpush1.msra.mxu0 0.0
        %778 = vmatprep.subr.mxu0 0.0
        %779 = vmatpush1.msra.mxu0 0.0
        %780 = vmatprep.subr.mxu0 0.0
        %781 = vmatpush1.msra.mxu0 0.0
        %782 = vmatprep.subr.mxu0 0.0
        %783 = vmatpush1.msra.mxu0 0.0
        %784 = vmatprep.subr.mxu0 0.0
        %785 = vmatpush1.msra.mxu0 0.0
        %786 = vmatprep.subr.mxu0 0.0
        %787 = vmatpush1.msra.mxu0 0.0
        %788 = vmatprep.subr.mxu0 0.0
        %789 = vmatpush1.msra.mxu0 0.0
        %790 = vmatprep.subr.mxu0 0.0
        %791 = vmatpush1.msra.mxu0 0.0
        %792 = vmatprep.subr.mxu0 0.0
        %793 = vmatpush1.msra.mxu0 0.0
        %794 = vmatprep.subr.mxu0 0.0
        %795 = vmatpush1.msra.mxu0 0.0
        %796 = vmatprep.subr.mxu0 0.0
        %797 = vmatpush1.msra.mxu0 0.0
        %798 = vmatprep.subr.mxu0 0.0
        %799 = vmatpush1.msra.mxu0 0.0
        %800 = vmatprep.subr.mxu0 0.0
        %801 = vmatpush1.msra.mxu0 0.0
        %802 = vmatprep.subr.mxu0 0.0
        %803 = vmatpush1.msra.mxu0 0.0
        %804 = vmatprep.subr.mxu0 0.0
        %805 = vmatpush1.msra.mxu0 0.0
        %806 = vmatprep.subr.mxu0 0.0
        %807 = vmatpush1.msra.mxu0 0.0
        %808 = vmatprep.subr.mxu0 0.0
        %809 = vmatpush1.msra.mxu0 0.0
        %810 = vmatprep.subr.mxu0 0.0
        %811 = vmatpush1.msra.mxu0 0.0
        %812 = vmatprep.subr.mxu0 0.0
        %813 = vmatpush1.msra.mxu0 0.0
        %814 = vmatprep.mubr.f32.mxu0 0.0
        %815 = vmatmul.mubr.f32.gmra.mrb[0].mxu0 %v748
        %v816 = vpop.f32.mrb[0].mxu0
        %v817 = vadd.f32 0.0, %v816
        %v818 = vpop.f32.mrb[0].mxu0
        %819 = vdwg.mxu0
        %v820 = vld [vmem:[%s2] sm:$0xff]
        %821 = vrot.lane.b32.xlu0 %v483, 120
        %v822 = vpop.permute.xlu0 %821
        %823 = vrot.lane.b32.xlu0 %v483, 88
        %v824 = vpop.permute.xlu0 %823
        %v825 = vsel %vm494, %v822, 0
        %v827 = vsel %vm494, %v824, 0
        %829 = vmatprep.subr.mxu0 0.0
        %830 = vmatpush1.xpose.msra.mxu0 %v827
        %831 = vmatprep.subr.mxu0 0.0
        %832 = vmatpush1.xpose.msra.mxu0 0.0
        %833 = vmatprep.subr.mxu0 0.0
        %834 = vmatpush1.xpose.msra.mxu0 0.0
        %835 = vmatprep.subr.mxu0 0.0
        %836 = vmatpush1.xpose.msra.mxu0 0.0
        %837 = vmatprep.subr.mxu0 0.0
        %838 = vmatpush1.xpose.msra.mxu0 0.0
        %839 = vmatprep.subr.mxu0 0.0
        %840 = vmatpush1.xpose.msra.mxu0 0.0
        %841 = vmatprep.subr.mxu0 0.0
        %842 = vmatpush1.xpose.msra.mxu0 0.0
        %843 = vmatprep.subr.mxu0 0.0
        %844 = vmatpush1.xpose.msra.mxu0 0.0
        %845 = vmatprep.subr.mxu0 0.0
        %846 = vmatpush1.xpose.msra.mxu0 0.0
        %847 = vmatprep.subr.mxu0 0.0
        %848 = vmatpush1.xpose.msra.mxu0 0.0
        %849 = vmatprep.subr.mxu0 0.0
        %850 = vmatpush1.xpose.msra.mxu0 0.0
        %851 = vmatprep.subr.mxu0 0.0
        %852 = vmatpush1.xpose.msra.mxu0 0.0
        %853 = vmatprep.subr.mxu0 0.0
        %854 = vmatpush1.xpose.msra.mxu0 0.0
        %855 = vmatprep.subr.mxu0 0.0
        %856 = vmatpush1.xpose.msra.mxu0 0.0
        %857 = vmatprep.subr.mxu0 0.0
        %858 = vmatpush1.xpose.msra.mxu0 0.0
        %859 = vmatprep.subr.mxu0 0.0
        %860 = vmatpush1.xpose.msra.mxu0 0.0
        %861 = vmatprep.subr.mxu0 0.0
        %862 = vmatpush1.xpose.msra.mxu0 0.0
        %863 = vmatprep.subr.mxu0 0.0
        %864 = vmatpush1.xpose.msra.mxu0 0.0
        %865 = vmatprep.subr.mxu0 0.0
        %866 = vmatpush1.xpose.msra.mxu0 0.0
        %867 = vmatprep.subr.mxu0 0.0
        %868 = vmatpush1.xpose.msra.mxu0 0.0
        %869 = vmatprep.subr.mxu0 0.0
        %870 = vmatpush1.xpose.msra.mxu0 0.0
        %871 = vmatprep.subr.mxu0 0.0
        %872 = vmatpush1.xpose.msra.mxu0 0.0
        %873 = vmatprep.subr.mxu0 0.0
        %874 = vmatpush1.xpose.msra.mxu0 0.0
        %875 = vmatprep.subr.mxu0 0.0
        %876 = vmatpush1.xpose.msra.mxu0 0.0
        %877 = vmatprep.subr.mxu0 0.0
        %878 = vmatpush1.xpose.msra.mxu0 0.0
        %879 = vmatprep.subr.mxu0 0.0
        %880 = vmatpush1.xpose.msra.mxu0 0.0
        %881 = vmatprep.subr.mxu0 0.0
        %882 = vmatpush1.xpose.msra.mxu0 0.0
        %883 = vmatprep.subr.mxu0 0.0
        %884 = vmatpush1.xpose.msra.mxu0 0.0
        %885 = vmatprep.subr.mxu0 0.0
        %886 = vmatpush1.xpose.msra.mxu0 0.0
        %887 = vmatprep.subr.mxu0 0.0
        %888 = vmatpush1.xpose.msra.mxu0 0.0
        %889 = vmatprep.subr.mxu0 0.0
        %890 = vmatpush1.xpose.msra.mxu0 0.0
        %891 = vmatprep.subr.mxu0 0.0
        %892 = vmatpush1.xpose.msra.mxu0 0.0
        %893 = vmatprep.mubr.f32.mxu0 0.0
        %894 = vmatmul.mubr.f32.gmra.mrb[0].mxu0 %v825
        %v895 = vpop.f32.mrb[0].mxu0
        %v896 = vadd.f32 0.0, %v895
        %v897 = vpop.f32.mrb[0].mxu0
        %898 = vdwg.mxu0
        %899 = vrot.lane.b32.xlu0 %v488, 120
        %v900 = vpop.permute.xlu0 %899
        %901 = vrot.lane.b32.xlu0 %v488, 88
        %v902 = vpop.permute.xlu0 %901
        %v903 = vsel %vm494, %v900, 0
        %v905 = vsel %vm494, %v902, 0
        %907 = vmatprep.subr.mxu0 0.0
        %908 = vmatpush1.xpose.msra.mxu0 %v905
        %909 = vmatprep.subr.mxu0 0.0
        %910 = vmatpush1.xpose.msra.mxu0 0.0
        %911 = vmatprep.subr.mxu0 0.0
        %912 = vmatpush1.xpose.msra.mxu0 0.0
        %913 = vmatprep.subr.mxu0 0.0
        %914 = vmatpush1.xpose.msra.mxu0 0.0
        %915 = vmatprep.subr.mxu0 0.0
        %916 = vmatpush1.xpose.msra.mxu0 0.0
        %917 = vmatprep.subr.mxu0 0.0
        %918 = vmatpush1.xpose.msra.mxu0 0.0
        %919 = vmatprep.subr.mxu0 0.0
        %920 = vmatpush1.xpose.msra.mxu0 0.0
        %921 = vmatprep.subr.mxu0 0.0
        %922 = vmatpush1.xpose.msra.mxu0 0.0
        %923 = vmatprep.subr.mxu0 0.0
        %924 = vmatpush1.xpose.msra.mxu0 0.0
        %925 = vmatprep.subr.mxu0 0.0
        %926 = vmatpush1.xpose.msra.mxu0 0.0
        %927 = vmatprep.subr.mxu0 0.0
        %928 = vmatpush1.xpose.msra.mxu0 0.0
        %929 = vmatprep.subr.mxu0 0.0
        %930 = vmatpush1.xpose.msra.mxu0 0.0
        %931 = vmatprep.subr.mxu0 0.0
        %932 = vmatpush1.xpose.msra.mxu0 0.0
        %933 = vmatprep.subr.mxu0 0.0
        %934 = vmatpush1.xpose.msra.mxu0 0.0
        %935 = vmatprep.subr.mxu0 0.0
        %936 = vmatpush1.xpose.msra.mxu0 0.0
        %937 = vmatprep.subr.mxu0 0.0
        %938 = vmatpush1.xpose.msra.mxu0 0.0
        %939 = vmatprep.subr.mxu0 0.0
        %940 = vmatpush1.xpose.msra.mxu0 0.0
        %941 = vmatprep.subr.mxu0 0.0
        %942 = vmatpush1.xpose.msra.mxu0 0.0
        %943 = vmatprep.subr.mxu0 0.0
        %944 = vmatpush1.xpose.msra.mxu0 0.0
        %945 = vmatprep.subr.mxu0 0.0
        %946 = vmatpush1.xpose.msra.mxu0 0.0
        %947 = vmatprep.subr.mxu0 0.0
        %948 = vmatpush1.xpose.msra.mxu0 0.0
        %949 = vmatprep.subr.mxu0 0.0
        %950 = vmatpush1.xpose.msra.mxu0 0.0
        %951 = vmatprep.subr.mxu0 0.0
        %952 = vmatpush1.xpose.msra.mxu0 0.0
        %953 = vmatprep.subr.mxu0 0.0
        %954 = vmatpush1.xpose.msra.mxu0 0.0
        %955 = vmatprep.subr.mxu0 0.0
        %956 = vmatpush1.xpose.msra.mxu0 0.0
        %957 = vmatprep.subr.mxu0 0.0
        %958 = vmatpush1.xpose.msra.mxu0 0.0
        %959 = vmatprep.subr.mxu0 0.0
        %960 = vmatpush1.xpose.msra.mxu0 0.0
        %961 = vmatprep.subr.mxu0 0.0
        %962 = vmatpush1.xpose.msra.mxu0 0.0
        %963 = vmatprep.subr.mxu0 0.0
        %964 = vmatpush1.xpose.msra.mxu0 0.0
        %965 = vmatprep.subr.mxu0 0.0
        %966 = vmatpush1.xpose.msra.mxu0 0.0
        %967 = vmatprep.subr.mxu0 0.0
        %968 = vmatpush1.xpose.msra.mxu0 0.0
        %969 = vmatprep.subr.mxu0 0.0
        %970 = vmatpush1.xpose.msra.mxu0 0.0
        %971 = vmatprep.mubr.f32.mxu0 0.0
        %972 = vmatmul.mubr.f32.gmra.mrb[0].mxu0 %v903
        %v973 = vpop.f32.mrb[0].mxu0
        %v974 = vadd.f32 0.0, %v973
        %v975 = vpop.f32.mrb[0].mxu0
        %976 = vdwg.mxu0
        %v977 = vsel %vm494, %v896, -inf
        %978 = vmax.xlane.f32.xlu0 %v977
        %v979 = vpop.xlane.xlu0 %978
        %v980 = vsel %vm494, %v974, -inf
        %981 = vmax.xlane.f32.xlu0 %v980
        %v982 = vpop.xlane.xlu0 %981
        %v983 = vsub.f32 %v896, %v979
        %v984 = vsub.f32 %v974, %v982
        %v985 = vmul.f32 %v983, 1.442695
        %v986 = vpow.pop %v985
        %v987 = vmul.f32 %v984, 1.442695
        %v988 = vpow.pop %v987
        %v989 = vsel %vm494, %v986, 0.0
        %990 = vadd.xlane.f32.xlu0 %v989
        %v991 = vpop.xlane.xlu0 %990
        %v992 = vsel %vm494, %v988, 0.0
        %993 = vadd.xlane.f32.xlu0 %v992
        %v994 = vpop.xlane.xlu0 %993
        %v995 = vrcp.pop %v991
        %v996 = vrcp.pop %v994
        %v997 = vmul.f32 %v986, %v995
        %v998 = vmul.f32 %v988, %v996
        %999 = vrot.lane.b32.xlu0 %v483, 56
        %v1000 = vpop.permute.xlu0 %999
        %v1003 = vsel %vm494, %v997, 0
        %1005 = vmatprep.subr.mxu0 0.0
        %1006 = vmatpush1.msra.mxu0 %v1000
        %1007 = vmatprep.subr.mxu0 0.0
        %1008 = vmatpush1.msra.mxu0 0.0
        %1009 = vmatprep.subr.mxu0 0.0
        %1010 = vmatpush1.msra.mxu0 0.0
        %1011 = vmatprep.subr.mxu0 0.0
        %1012 = vmatpush1.msra.mxu0 0.0
        %1013 = vmatprep.subr.mxu0 0.0
        %1014 = vmatpush1.msra.mxu0 0.0
        %1015 = vmatprep.subr.mxu0 0.0
        %1016 = vmatpush1.msra.mxu0 0.0
        %1017 = vmatprep.subr.mxu0 0.0
        %1018 = vmatpush1.msra.mxu0 0.0
        %1019 = vmatprep.subr.mxu0 0.0
        %1020 = vmatpush1.msra.mxu0 0.0
        %1021 = vmatprep.subr.mxu0 0.0
        %1022 = vmatpush1.msra.mxu0 0.0
        %1023 = vmatprep.subr.mxu0 0.0
        %1024 = vmatpush1.msra.mxu0 0.0
        %1025 = vmatprep.subr.mxu0 0.0
        %1026 = vmatpush1.msra.mxu0 0.0
        %1027 = vmatprep.subr.mxu0 0.0
        %1028 = vmatpush1.msra.mxu0 0.0
        %1029 = vmatprep.subr.mxu0 0.0
        %1030 = vmatpush1.msra.mxu0 0.0
        %1031 = vmatprep.subr.mxu0 0.0
        %1032 = vmatpush1.msra.mxu0 0.0
        %1033 = vmatprep.subr.mxu0 0.0
        %1034 = vmatpush1.msra.mxu0 0.0
        %1035 = vmatprep.subr.mxu0 0.0
        %1036 = vmatpush1.msra.mxu0 0.0
        %1037 = vmatprep.subr.mxu0 0.0
        %1038 = vmatpush1.msra.mxu0 0.0
        %1039 = vmatprep.subr.mxu0 0.0
        %1040 = vmatpush1.msra.mxu0 0.0
        %1041 = vmatprep.subr.mxu0 0.0
        %1042 = vmatpush1.msra.mxu0 0.0
        %1043 = vmatprep.subr.mxu0 0.0
        %1044 = vmatpush1.msra.mxu0 0.0
        %1045 = vmatprep.subr.mxu0 0.0
        %1046 = vmatpush1.msra.mxu0 0.0
        %1047 = vmatprep.subr.mxu0 0.0
        %1048 = vmatpush1.msra.mxu0 0.0
        %1049 = vmatprep.subr.mxu0 0.0
        %1050 = vmatpush1.msra.mxu0 0.0
        %1051 = vmatprep.subr.mxu0 0.0
        %1052 = vmatpush1.msra.mxu0 0.0
        %1053 = vmatprep.subr.mxu0 0.0
        %1054 = vmatpush1.msra.mxu0 0.0
        %1055 = vmatprep.subr.mxu0 0.0
        %1056 = vmatpush1.msra.mxu0 0.0
        %1057 = vmatprep.subr.mxu0 0.0
        %1058 = vmatpush1.msra.mxu0 0.0
        %1059 = vmatprep.subr.mxu0 0.0
        %1060 = vmatpush1.msra.mxu0 0.0
        %1061 = vmatprep.subr.mxu0 0.0
        %1062 = vmatpush1.msra.mxu0 0.0
        %1063 = vmatprep.subr.mxu0 0.0
        %1064 = vmatpush1.msra.mxu0 0.0
        %1065 = vmatprep.subr.mxu0 0.0
        %1066 = vmatpush1.msra.mxu0 0.0
        %1067 = vmatprep.subr.mxu0 0.0
        %1068 = vmatpush1.msra.mxu0 0.0
        %1069 = vmatprep.mubr.f32.mxu0 0.0
        %1070 = vmatmul.mubr.f32.gmra.mrb[0].mxu0 %v1003
        %v1071 = vpop.f32.mrb[0].mxu0
        %v1072 = vadd.f32 0.0, %v1071
        %v1073 = vpop.f32.mrb[0].mxu0
        %1074 = vdwg.mxu0
        %1075 = vrot.lane.b32.xlu0 %v488, 56
        %v1076 = vpop.permute.xlu0 %1075
        %v1079 = vsel %vm494, %v998, 0
        %1081 = vmatprep.subr.mxu0 0.0
        %1082 = vmatpush1.msra.mxu0 %v1076
        %1083 = vmatprep.subr.mxu0 0.0
        %1084 = vmatpush1.msra.mxu0 0.0
        %1085 = vmatprep.subr.mxu0 0.0
        %1086 = vmatpush1.msra.mxu0 0.0
        %1087 = vmatprep.subr.mxu0 0.0
        %1088 = vmatpush1.msra.mxu0 0.0
        %1089 = vmatprep.subr.mxu0 0.0
        %1090 = vmatpush1.msra.mxu0 0.0
        %1091 = vmatprep.subr.mxu0 0.0
        %1092 = vmatpush1.msra.mxu0 0.0
        %1093 = vmatprep.subr.mxu0 0.0
        %1094 = vmatpush1.msra.mxu0 0.0
        %1095 = vmatprep.subr.mxu0 0.0
        %1096 = vmatpush1.msra.mxu0 0.0
        %1097 = vmatprep.subr.mxu0 0.0
        %1098 = vmatpush1.msra.mxu0 0.0
        %1099 = vmatprep.subr.mxu0 0.0
        %1100 = vmatpush1.msra.mxu0 0.0
        %1101 = vmatprep.subr.mxu0 0.0
        %1102 = vmatpush1.msra.mxu0 0.0
        %1103 = vmatprep.subr.mxu0 0.0
        %1104 = vmatpush1.msra.mxu0 0.0
        %1105 = vmatprep.subr.mxu0 0.0
        %1106 = vmatpush1.msra.mxu0 0.0
        %1107 = vmatprep.subr.mxu0 0.0
        %1108 = vmatpush1.msra.mxu0 0.0
        %1109 = vmatprep.subr.mxu0 0.0
        %1110 = vmatpush1.msra.mxu0 0.0
        %1111 = vmatprep.subr.mxu0 0.0
        %1112 = vmatpush1.msra.mxu0 0.0
        %1113 = vmatprep.subr.mxu0 0.0
        %1114 = vmatpush1.msra.mxu0 0.0
        %1115 = vmatprep.subr.mxu0 0.0
        %1116 = vmatpush1.msra.mxu0 0.0
        %1117 = vmatprep.subr.mxu0 0.0
        %1118 = vmatpush1.msra.mxu0 0.0
        %1119 = vmatprep.subr.mxu0 0.0
        %1120 = vmatpush1.msra.mxu0 0.0
        %1121 = vmatprep.subr.mxu0 0.0
        %1122 = vmatpush1.msra.mxu0 0.0
        %1123 = vmatprep.subr.mxu0 0.0
        %1124 = vmatpush1.msra.mxu0 0.0
        %1125 = vmatprep.subr.mxu0 0.0
        %1126 = vmatpush1.msra.mxu0 0.0
        %1127 = vmatprep.subr.mxu0 0.0
        %1128 = vmatpush1.msra.mxu0 0.0
        %1129 = vmatprep.subr.mxu0 0.0
        %1130 = vmatpush1.msra.mxu0 0.0
        %1131 = vmatprep.subr.mxu0 0.0
        %1132 = vmatpush1.msra.mxu0 0.0
        %1133 = vmatprep.subr.mxu0 0.0
        %1134 = vmatpush1.msra.mxu0 0.0
        %1135 = vmatprep.subr.mxu0 0.0
        %1136 = vmatpush1.msra.mxu0 0.0
        %1137 = vmatprep.subr.mxu0 0.0
        %1138 = vmatpush1.msra.mxu0 0.0
        %1139 = vmatprep.subr.mxu0 0.0
        %1140 = vmatpush1.msra.mxu0 0.0
        %1141 = vmatprep.subr.mxu0 0.0
        %1142 = vmatpush1.msra.mxu0 0.0
        %1143 = vmatprep.subr.mxu0 0.0
        %1144 = vmatpush1.msra.mxu0 0.0
        %1145 = vmatprep.mubr.f32.mxu0 0.0
        %1146 = vmatmul.mubr.f32.gmra.mrb[0].mxu0 %v1079
        %v1147 = vpop.f32.mrb[0].mxu0
        %v1148 = vadd.f32 0.0, %v1147
        %v1149 = vpop.f32.mrb[0].mxu0
        %1150 = vdwg.mxu0
        %s1151 = scalar_lea.vmem %s2, 8
        %v1152 = vld [vmem:[%s1151] sm:$0xff]
        %v1154 = vsel %vm494, %v1072, 0
        %v1157 = vsel %vm494, %v1148, 0
        %1159 = vmatprep.subr.mxu0 0.0
        %1160 = vmatpush1.msra.mxu0 %v1152
        %1161 = vmatprep.subr.mxu0 0.0
        %1162 = vmatpush1.msra.mxu0 0.0
        %1163 = vmatprep.subr.mxu0 0.0
        %1164 = vmatpush1.msra.mxu0 0.0
        %1165 = vmatprep.subr.mxu0 0.0
        %1166 = vmatpush1.msra.mxu0 0.0
        %1167 = vmatprep.subr.mxu0 0.0
        %1168 = vmatpush1.msra.mxu0 0.0
        %1169 = vmatprep.subr.mxu0 0.0
        %1170 = vmatpush1.msra.mxu0 0.0
        %1171 = vmatprep.subr.mxu0 0.0
        %1172 = vmatpush1.msra.mxu0 0.0
        %1173 = vmatprep.subr.mxu0 0.0
        %1174 = vmatpush1.msra.mxu0 0.0
        %1175 = vmatprep.subr.mxu0 0.0
        %1176 = vmatpush1.msra.mxu0 0.0
        %1177 = vmatprep.subr.mxu0 0.0
        %1178 = vmatpush1.msra.mxu0 0.0
        %1179 = vmatprep.subr.mxu0 0.0
        %1180 = vmatpush1.msra.mxu0 0.0
        %1181 = vmatprep.subr.mxu0 0.0
        %1182 = vmatpush1.msra.mxu0 0.0
        %1183 = vmatprep.subr.mxu0 0.0
        %1184 = vmatpush1.msra.mxu0 0.0
        %1185 = vmatprep.subr.mxu0 0.0
        %1186 = vmatpush1.msra.mxu0 0.0
        %1187 = vmatprep.subr.mxu0 0.0
        %1188 = vmatpush1.msra.mxu0 0.0
        %1189 = vmatprep.subr.mxu0 0.0
        %1190 = vmatpush1.msra.mxu0 0.0
        %1191 = vmatprep.subr.mxu0 0.0
        %1192 = vmatpush1.msra.mxu0 0.0
        %1193 = vmatprep.subr.mxu0 0.0
        %1194 = vmatpush1.msra.mxu0 0.0
        %1195 = vmatprep.subr.mxu0 0.0
        %1196 = vmatpush1.msra.mxu0 0.0
        %1197 = vmatprep.subr.mxu0 0.0
        %1198 = vmatpush1.msra.mxu0 0.0
        %1199 = vmatprep.subr.mxu0 0.0
        %1200 = vmatpush1.msra.mxu0 0.0
        %1201 = vmatprep.subr.mxu0 0.0
        %1202 = vmatpush1.msra.mxu0 0.0
        %1203 = vmatprep.subr.mxu0 0.0
        %1204 = vmatpush1.msra.mxu0 0.0
        %1205 = vmatprep.subr.mxu0 0.0
        %1206 = vmatpush1.msra.mxu0 0.0
        %1207 = vmatprep.subr.mxu0 0.0
        %1208 = vmatpush1.msra.mxu0 0.0
        %1209 = vmatprep.subr.mxu0 0.0
        %1210 = vmatpush1.msra.mxu0 0.0
        %1211 = vmatprep.subr.mxu0 0.0
        %1212 = vmatpush1.msra.mxu0 0.0
        %1213 = vmatprep.subr.mxu0 0.0
        %1214 = vmatpush1.msra.mxu0 0.0
        %1215 = vmatprep.subr.mxu0 0.0
        %1216 = vmatpush1.msra.mxu0 0.0
        %1217 = vmatprep.subr.mxu0 0.0
        %1218 = vmatpush1.msra.mxu0 0.0
        %1219 = vmatprep.subr.mxu0 0.0
        %1220 = vmatpush1.msra.mxu0 0.0
        %1221 = vmatprep.subr.mxu0 0.0
        %1222 = vmatpush1.msra.mxu0 0.0
        %1223 = vmatprep.mubr.f32.mxu0 0.0
        %1224 = vmatmul.mubr.f32.gmra.mrb[0].mxu0 %v1154
        %v1225 = vpop.f32.mrb[0].mxu0
        %v1226 = vadd.f32 0.0, %v1225
        %v1227 = vpop.f32.mrb[0].mxu0
        %1228 = vmatprep.mubr.f32.mxu0 0.0
        %1229 = vmatmul.mubr.f32.gmra.mrb[0].mxu0 %v1157
        %v1230 = vpop.f32.mrb[0].mxu0
        %v1231 = vadd.f32 0.0, %v1230
        %v1232 = vpop.f32.mrb[0].mxu0
        %1233 = vdwg.mxu0
        %v1235 = vsel %vm494, %v741, 0
        %v1238 = vsel %vm494, %v817, 0
        %1240 = vmatprep.subr.mxu0 0.0
        %1241 = vmatpush1.msra.mxu0 %v820
        %1242 = vmatprep.subr.mxu0 0.0
        %1243 = vmatpush1.msra.mxu0 0.0
        %1244 = vmatprep.subr.mxu0 0.0
        %1245 = vmatpush1.msra.mxu0 0.0
        %1246 = vmatprep.subr.mxu0 0.0
        %1247 = vmatpush1.msra.mxu0 0.0
        %1248 = vmatprep.subr.mxu0 0.0
        %1249 = vmatpush1.msra.mxu0 0.0
        %1250 = vmatprep.subr.mxu0 0.0
        %1251 = vmatpush1.msra.mxu0 0.0
        %1252 = vmatprep.subr.mxu0 0.0
        %1253 = vmatpush1.msra.mxu0 0.0
        %1254 = vmatprep.subr.mxu0 0.0
        %1255 = vmatpush1.msra.mxu0 0.0
        %1256 = vmatprep.subr.mxu0 0.0
        %1257 = vmatpush1.msra.mxu0 0.0
        %1258 = vmatprep.subr.mxu0 0.0
        %1259 = vmatpush1.msra.mxu0 0.0
        %1260 = vmatprep.subr.mxu0 0.0
        %1261 = vmatpush1.msra.mxu0 0.0
        %1262 = vmatprep.subr.mxu0 0.0
        %1263 = vmatpush1.msra.mxu0 0.0
        %1264 = vmatprep.subr.mxu0 0.0
        %1265 = vmatpush1.msra.mxu0 0.0
        %1266 = vmatprep.subr.mxu0 0.0
        %1267 = vmatpush1.msra.mxu0 0.0
        %1268 = vmatprep.subr.mxu0 0.0
        %1269 = vmatpush1.msra.mxu0 0.0
        %1270 = vmatprep.subr.mxu0 0.0
        %1271 = vmatpush1.msra.mxu0 0.0
        %1272 = vmatprep.subr.mxu0 0.0
        %1273 = vmatpush1.msra.mxu0 0.0
        %1274 = vmatprep.subr.mxu0 0.0
        %1275 = vmatpush1.msra.mxu0 0.0
        %1276 = vmatprep.subr.mxu0 0.0
        %1277 = vmatpush1.msra.mxu0 0.0
        %1278 = vmatprep.subr.mxu0 0.0
        %1279 = vmatpush1.msra.mxu0 0.0
        %1280 = vmatprep.subr.mxu0 0.0
        %1281 = vmatpush1.msra.mxu0 0.0
        %1282 = vmatprep.subr.mxu0 0.0
        %1283 = vmatpush1.msra.mxu0 0.0
        %1284 = vmatprep.subr.mxu0 0.0
        %1285 = vmatpush1.msra.mxu0 0.0
        %1286 = vmatprep.subr.mxu0 0.0
        %1287 = vmatpush1.msra.mxu0 0.0
        %1288 = vmatprep.subr.mxu0 0.0
        %1289 = vmatpush1.msra.mxu0 0.0
        %1290 = vmatprep.subr.mxu0 0.0
        %1291 = vmatpush1.msra.mxu0 0.0
        %1292 = vmatprep.subr.mxu0 0.0
        %1293 = vmatpush1.msra.mxu0 0.0
        %1294 = vmatprep.subr.mxu0 0.0
        %1295 = vmatpush1.msra.mxu0 0.0
        %1296 = vmatprep.subr.mxu0 0.0
        %1297 = vmatpush1.msra.mxu0 0.0
        %1298 = vmatprep.subr.mxu0 0.0
        %1299 = vmatpush1.msra.mxu0 0.0
        %1300 = vmatprep.subr.mxu0 0.0
        %1301 = vmatpush1.msra.mxu0 0.0
        %1302 = vmatprep.subr.mxu0 0.0
        %1303 = vmatpush1.msra.mxu0 0.0
        %1304 = vmatprep.mubr.f32.mxu0 0.0
        %1305 = vmatmul.mubr.f32.gmra.mrb[0].mxu0 %v1235
        %v1306 = vpop.f32.mrb[0].mxu0
        %v1307 = vadd.f32 %v1226, %v1306
        %v1308 = vpop.f32.mrb[0].mxu0
        %1309 = vmatprep.mubr.f32.mxu0 0.0
        %1310 = vmatmul.mubr.f32.gmra.mrb[0].mxu0 %v1238
        %v1311 = vpop.f32.mrb[0].mxu0
        %v1312 = vadd.f32 %v1231, %v1311
        %v1313 = vpop.f32.mrb[0].mxu0
        %1314 = vdwg.mxu0
        %1315 = vrot.lane.b32.xlu0 %v483, 112
        %v1316 = vpop.permute.xlu0 %1315
        %1317 = vrot.lane.b32.xlu0 %v483, 80
        %v1318 = vpop.permute.xlu0 %1317
        %v1319 = vsel %vm494, %v1316, 0
        %v1321 = vsel %vm494, %v1318, 0
        %1323 = vmatprep.subr.mxu0 0.0
        %1324 = vmatpush1.xpose.msra.mxu0 %v1321
        %1325 = vmatprep.subr.mxu0 0.0
        %1326 = vmatpush1.xpose.msra.mxu0 0.0
        %1327 = vmatprep.subr.mxu0 0.0
        %1328 = vmatpush1.xpose.msra.mxu0 0.0
        %1329 = vmatprep.subr.mxu0 0.0
        %1330 = vmatpush1.xpose.msra.mxu0 0.0
        %1331 = vmatprep.subr.mxu0 0.0
        %1332 = vmatpush1.xpose.msra.mxu0 0.0
        %1333 = vmatprep.subr.mxu0 0.0
        %1334 = vmatpush1.xpose.msra.mxu0 0.0
        %1335 = vmatprep.subr.mxu0 0.0
        %1336 = vmatpush1.xpose.msra.mxu0 0.0
        %1337 = vmatprep.subr.mxu0 0.0
        %1338 = vmatpush1.xpose.msra.mxu0 0.0
        %1339 = vmatprep.subr.mxu0 0.0
        %1340 = vmatpush1.xpose.msra.mxu0 0.0
        %1341 = vmatprep.subr.mxu0 0.0
        %1342 = vmatpush1.xpose.msra.mxu0 0.0
        %1343 = vmatprep.subr.mxu0 0.0
        %1344 = vmatpush1.xpose.msra.mxu0 0.0
        %1345 = vmatprep.subr.mxu0 0.0
        %1346 = vmatpush1.xpose.msra.mxu0 0.0
        %1347 = vmatprep.subr.mxu0 0.0
        %1348 = vmatpush1.xpose.msra.mxu0 0.0
        %1349 = vmatprep.subr.mxu0 0.0
        %1350 = vmatpush1.xpose.msra.mxu0 0.0
        %1351 = vmatprep.subr.mxu0 0.0
        %1352 = vmatpush1.xpose.msra.mxu0 0.0
        %1353 = vmatprep.subr.mxu0 0.0
        %1354 = vmatpush1.xpose.msra.mxu0 0.0
        %1355 = vmatprep.subr.mxu0 0.0
        %1356 = vmatpush1.xpose.msra.mxu0 0.0
        %1357 = vmatprep.subr.mxu0 0.0
        %1358 = vmatpush1.xpose.msra.mxu0 0.0
        %1359 = vmatprep.subr.mxu0 0.0
        %1360 = vmatpush1.xpose.msra.mxu0 0.0
        %1361 = vmatprep.subr.mxu0 0.0
        %1362 = vmatpush1.xpose.msra.mxu0 0.0
        %1363 = vmatprep.subr.mxu0 0.0
        %1364 = vmatpush1.xpose.msra.mxu0 0.0
        %1365 = vmatprep.subr.mxu0 0.0
        %1366 = vmatpush1.xpose.msra.mxu0 0.0
        %1367 = vmatprep.subr.mxu0 0.0
        %1368 = vmatpush1.xpose.msra.mxu0 0.0
        %1369 = vmatprep.subr.mxu0 0.0
        %1370 = vmatpush1.xpose.msra.mxu0 0.0
        %1371 = vmatprep.subr.mxu0 0.0
        %1372 = vmatpush1.xpose.msra.mxu0 0.0
        %1373 = vmatprep.subr.mxu0 0.0
        %1374 = vmatpush1.xpose.msra.mxu0 0.0
        %1375 = vmatprep.subr.mxu0 0.0
        %1376 = vmatpush1.xpose.msra.mxu0 0.0
        %1377 = vmatprep.subr.mxu0 0.0
        %1378 = vmatpush1.xpose.msra.mxu0 0.0
        %1379 = vmatprep.subr.mxu0 0.0
        %1380 = vmatpush1.xpose.msra.mxu0 0.0
        %1381 = vmatprep.subr.mxu0 0.0
        %1382 = vmatpush1.xpose.msra.mxu0 0.0
        %1383 = vmatprep.subr.mxu0 0.0
        %1384 = vmatpush1.xpose.msra.mxu0 0.0
        %1385 = vmatprep.subr.mxu0 0.0
        %1386 = vmatpush1.xpose.msra.mxu0 0.0
        %1387 = vmatprep.mubr.f32.mxu0 0.0
        %1388 = vmatmul.mubr.f32.gmra.mrb[0].mxu0 %v1319
        %v1389 = vpop.f32.mrb[0].mxu0
        %v1390 = vadd.f32 0.0, %v1389
        %v1391 = vpop.f32.mrb[0].mxu0
        %1392 = vdwg.mxu0
        %1393 = vrot.lane.b32.xlu0 %v488, 112
        %v1394 = vpop.permute.xlu0 %1393
        %1395 = vrot.lane.b32.xlu0 %v488, 80
        %v1396 = vpop.permute.xlu0 %1395
        %v1397 = vsel %vm494, %v1394, 0
        %v1399 = vsel %vm494, %v1396, 0
        %1401 = vmatprep.subr.mxu0 0.0
        %1402 = vmatpush1.xpose.msra.mxu0 %v1399
        %1403 = vmatprep.subr.mxu0 0.0
        %1404 = vmatpush1.xpose.msra.mxu0 0.0
        %1405 = vmatprep.subr.mxu0 0.0
        %1406 = vmatpush1.xpose.msra.mxu0 0.0
        %1407 = vmatprep.subr.mxu0 0.0
        %1408 = vmatpush1.xpose.msra.mxu0 0.0
        %1409 = vmatprep.subr.mxu0 0.0
        %1410 = vmatpush1.xpose.msra.mxu0 0.0
        %1411 = vmatprep.subr.mxu0 0.0
        %1412 = vmatpush1.xpose.msra.mxu0 0.0
        %1413 = vmatprep.subr.mxu0 0.0
        %1414 = vmatpush1.xpose.msra.mxu0 0.0
        %1415 = vmatprep.subr.mxu0 0.0
        %1416 = vmatpush1.xpose.msra.mxu0 0.0
        %1417 = vmatprep.subr.mxu0 0.0
        %1418 = vmatpush1.xpose.msra.mxu0 0.0
        %1419 = vmatprep.subr.mxu0 0.0
        %1420 = vmatpush1.xpose.msra.mxu0 0.0
        %1421 = vmatprep.subr.mxu0 0.0
        %1422 = vmatpush1.xpose.msra.mxu0 0.0
        %1423 = vmatprep.subr.mxu0 0.0
        %1424 = vmatpush1.xpose.msra.mxu0 0.0
        %1425 = vmatprep.subr.mxu0 0.0
        %1426 = vmatpush1.xpose.msra.mxu0 0.0
        %1427 = vmatprep.subr.mxu0 0.0
        %1428 = vmatpush1.xpose.msra.mxu0 0.0
        %1429 = vmatprep.subr.mxu0 0.0
        %1430 = vmatpush1.xpose.msra.mxu0 0.0
        %1431 = vmatprep.subr.mxu0 0.0
        %1432 = vmatpush1.xpose.msra.mxu0 0.0
        %1433 = vmatprep.subr.mxu0 0.0
        %1434 = vmatpush1.xpose.msra.mxu0 0.0
        %1435 = vmatprep.subr.mxu0 0.0
        %1436 = vmatpush1.xpose.msra.mxu0 0.0
        %1437 = vmatprep.subr.mxu0 0.0
        %1438 = vmatpush1.xpose.msra.mxu0 0.0
        %1439 = vmatprep.subr.mxu0 0.0
        %1440 = vmatpush1.xpose.msra.mxu0 0.0
        %1441 = vmatprep.subr.mxu0 0.0
        %1442 = vmatpush1.xpose.msra.mxu0 0.0
        %1443 = vmatprep.subr.mxu0 0.0
        %1444 = vmatpush1.xpose.msra.mxu0 0.0
        %1445 = vmatprep.subr.mxu0 0.0
        %1446 = vmatpush1.xpose.msra.mxu0 0.0
        %1447 = vmatprep.subr.mxu0 0.0
        %1448 = vmatpush1.xpose.msra.mxu0 0.0
        %1449 = vmatprep.subr.mxu0 0.0
        %1450 = vmatpush1.xpose.msra.mxu0 0.0
        %1451 = vmatprep.subr.mxu0 0.0
        %1452 = vmatpush1.xpose.msra.mxu0 0.0
        %1453 = vmatprep.subr.mxu0 0.0
        %1454 = vmatpush1.xpose.msra.mxu0 0.0
        %1455 = vmatprep.subr.mxu0 0.0
        %1456 = vmatpush1.xpose.msra.mxu0 0.0
        %1457 = vmatprep.subr.mxu0 0.0
        %1458 = vmatpush1.xpose.msra.mxu0 0.0
        %1459 = vmatprep.subr.mxu0 0.0
        %1460 = vmatpush1.xpose.msra.mxu0 0.0
        %1461 = vmatprep.subr.mxu0 0.0
        %1462 = vmatpush1.xpose.msra.mxu0 0.0
        %1463 = vmatprep.subr.mxu0 0.0
        %1464 = vmatpush1.xpose.msra.mxu0 0.0
        %1465 = vmatprep.mubr.f32.mxu0 0.0
        %1466 = vmatmul.mubr.f32.gmra.mrb[0].mxu0 %v1397
        %v1467 = vpop.f32.mrb[0].mxu0
        %v1468 = vadd.f32 0.0, %v1467
        %v1469 = vpop.f32.mrb[0].mxu0
        %1470 = vdwg.mxu0
        %v1471 = vsel %vm494, %v1390, -inf
        %1472 = vmax.xlane.f32.xlu0 %v1471
        %v1473 = vpop.xlane.xlu0 %1472
        %v1474 = vsel %vm494, %v1468, -inf
        %1475 = vmax.xlane.f32.xlu0 %v1474
        %v1476 = vpop.xlane.xlu0 %1475
        %v1477 = vsub.f32 %v1390, %v1473
        %v1478 = vsub.f32 %v1468, %v1476
        %v1479 = vmul.f32 %v1477, 1.442695
        %v1480 = vpow.pop %v1479
        %v1481 = vmul.f32 %v1478, 1.442695
        %v1482 = vpow.pop %v1481
        %v1483 = vsel %vm494, %v1480, 0.0
        %1484 = vadd.xlane.f32.xlu0 %v1483
        %v1485 = vpop.xlane.xlu0 %1484
        %v1486 = vsel %vm494, %v1482, 0.0
        %1487 = vadd.xlane.f32.xlu0 %v1486
        %v1488 = vpop.xlane.xlu0 %1487
        %v1489 = vrcp.pop %v1485
        %v1490 = vrcp.pop %v1488
        %v1491 = vmul.f32 %v1480, %v1489
        %v1492 = vmul.f32 %v1482, %v1490
        %1493 = vrot.lane.b32.xlu0 %v483, 48
        %v1494 = vpop.permute.xlu0 %1493
        %v1497 = vsel %vm494, %v1491, 0
        %1499 = vmatprep.subr.mxu0 0.0
        %1500 = vmatpush1.msra.mxu0 %v1494
        %1501 = vmatprep.subr.mxu0 0.0
        %1502 = vmatpush1.msra.mxu0 0.0
        %1503 = vmatprep.subr.mxu0 0.0
        %1504 = vmatpush1.msra.mxu0 0.0
        %1505 = vmatprep.subr.mxu0 0.0
        %1506 = vmatpush1.msra.mxu0 0.0
        %1507 = vmatprep.subr.mxu0 0.0
        %1508 = vmatpush1.msra.mxu0 0.0
        %1509 = vmatprep.subr.mxu0 0.0
        %1510 = vmatpush1.msra.mxu0 0.0
        %1511 = vmatprep.subr.mxu0 0.0
        %1512 = vmatpush1.msra.mxu0 0.0
        %1513 = vmatprep.subr.mxu0 0.0
        %1514 = vmatpush1.msra.mxu0 0.0
        %1515 = vmatprep.subr.mxu0 0.0
        %1516 = vmatpush1.msra.mxu0 0.0
        %1517 = vmatprep.subr.mxu0 0.0
        %1518 = vmatpush1.msra.mxu0 0.0
        %1519 = vmatprep.subr.mxu0 0.0
        %1520 = vmatpush1.msra.mxu0 0.0
        %1521 = vmatprep.subr.mxu0 0.0
        %1522 = vmatpush1.msra.mxu0 0.0
        %1523 = vmatprep.subr.mxu0 0.0
        %1524 = vmatpush1.msra.mxu0 0.0
        %1525 = vmatprep.subr.mxu0 0.0
        %1526 = vmatpush1.msra.mxu0 0.0
        %1527 = vmatprep.subr.mxu0 0.0
        %1528 = vmatpush1.msra.mxu0 0.0
        %1529 = vmatprep.subr.mxu0 0.0
        %1530 = vmatpush1.msra.mxu0 0.0
        %1531 = vmatprep.subr.mxu0 0.0
        %1532 = vmatpush1.msra.mxu0 0.0
        %1533 = vmatprep.subr.mxu0 0.0
        %1534 = vmatpush1.msra.mxu0 0.0
        %1535 = vmatprep.subr.mxu0 0.0
        %1536 = vmatpush1.msra.mxu0 0.0
        %1537 = vmatprep.subr.mxu0 0.0
        %1538 = vmatpush1.msra.mxu0 0.0
        %1539 = vmatprep.subr.mxu0 0.0
        %1540 = vmatpush1.msra.mxu0 0.0
        %1541 = vmatprep.subr.mxu0 0.0
        %1542 = vmatpush1.msra.mxu0 0.0
        %1543 = vmatprep.subr.mxu0 0.0
        %1544 = vmatpush1.msra.mxu0 0.0
        %1545 = vmatprep.subr.mxu0 0.0
        %1546 = vmatpush1.msra.mxu0 0.0
        %1547 = vmatprep.subr.mxu0 0.0
        %1548 = vmatpush1.msra.mxu0 0.0
        %1549 = vmatprep.subr.mxu0 0.0
        %1550 = vmatpush1.msra.mxu0 0.0
        %1551 = vmatprep.subr.mxu0 0.0
        %1552 = vmatpush1.msra.mxu0 0.0
        %1553 = vmatprep.subr.mxu0 0.0
        %1554 = vmatpush1.msra.mxu0 0.0
        %1555 = vmatprep.subr.mxu0 0.0
        %1556 = vmatpush1.msra.mxu0 0.0
        %1557 = vmatprep.subr.mxu0 0.0
        %1558 = vmatpush1.msra.mxu0 0.0
        %1559 = vmatprep.subr.mxu0 0.0
        %1560 = vmatpush1.msra.mxu0 0.0
        %1561 = vmatprep.subr.mxu0 0.0
        %1562 = vmatpush1.msra.mxu0 0.0
        %1563 = vmatprep.mubr.f32.mxu0 0.0
        %1564 = vmatmul.mubr.f32.gmra.mrb[0].mxu0 %v1497
        %v1565 = vpop.f32.mrb[0].mxu0
        %v1566 = vadd.f32 0.0, %v1565
        %v1567 = vpop.f32.mrb[0].mxu0
        %1568 = vdwg.mxu0
        %1569 = vrot.lane.b32.xlu0 %v488, 48
        %v1570 = vpop.permute.xlu0 %1569
        %v1573 = vsel %vm494, %v1492, 0
        %1575 = vmatprep.subr.mxu0 0.0
        %1576 = vmatpush1.msra.mxu0 %v1570
        %1577 = vmatprep.subr.mxu0 0.0
        %1578 = vmatpush1.msra.mxu0 0.0
        %1579 = vmatprep.subr.mxu0 0.0
        %1580 = vmatpush1.msra.mxu0 0.0
        %1581 = vmatprep.subr.mxu0 0.0
        %1582 = vmatpush1.msra.mxu0 0.0
        %1583 = vmatprep.subr.mxu0 0.0
        %1584 = vmatpush1.msra.mxu0 0.0
        %1585 = vmatprep.subr.mxu0 0.0
        %1586 = vmatpush1.msra.mxu0 0.0
        %1587 = vmatprep.subr.mxu0 0.0
        %1588 = vmatpush1.msra.mxu0 0.0
        %1589 = vmatprep.subr.mxu0 0.0
        %1590 = vmatpush1.msra.mxu0 0.0
        %1591 = vmatprep.subr.mxu0 0.0
        %1592 = vmatpush1.msra.mxu0 0.0
        %1593 = vmatprep.subr.mxu0 0.0
        %1594 = vmatpush1.msra.mxu0 0.0
        %1595 = vmatprep.subr.mxu0 0.0
        %1596 = vmatpush1.msra.mxu0 0.0
        %1597 = vmatprep.subr.mxu0 0.0
        %1598 = vmatpush1.msra.mxu0 0.0
        %1599 = vmatprep.subr.mxu0 0.0
        %1600 = vmatpush1.msra.mxu0 0.0
        %1601 = vmatprep.subr.mxu0 0.0
        %1602 = vmatpush1.msra.mxu0 0.0
        %1603 = vmatprep.subr.mxu0 0.0
        %1604 = vmatpush1.msra.mxu0 0.0
        %1605 = vmatprep.subr.mxu0 0.0
        %1606 = vmatpush1.msra.mxu0 0.0
        %1607 = vmatprep.subr.mxu0 0.0
        %1608 = vmatpush1.msra.mxu0 0.0
        %1609 = vmatprep.subr.mxu0 0.0
        %1610 = vmatpush1.msra.mxu0 0.0
        %1611 = vmatprep.subr.mxu0 0.0
        %1612 = vmatpush1.msra.mxu0 0.0
        %1613 = vmatprep.subr.mxu0 0.0
        %1614 = vmatpush1.msra.mxu0 0.0
        %1615 = vmatprep.subr.mxu0 0.0
        %1616 = vmatpush1.msra.mxu0 0.0
        %1617 = vmatprep.subr.mxu0 0.0
        %1618 = vmatpush1.msra.mxu0 0.0
        %1619 = vmatprep.subr.mxu0 0.0
        %1620 = vmatpush1.msra.mxu0 0.0
        %1621 = vmatprep.subr.mxu0 0.0
        %1622 = vmatpush1.msra.mxu0 0.0
        %1623 = vmatprep.subr.mxu0 0.0
        %1624 = vmatpush1.msra.mxu0 0.0
        %1625 = vmatprep.subr.mxu0 0.0
        %1626 = vmatpush1.msra.mxu0 0.0
        %1627 = vmatprep.subr.mxu0 0.0
        %1628 = vmatpush1.msra.mxu0 0.0
        %1629 = vmatprep.subr.mxu0 0.0
        %1630 = vmatpush1.msra.mxu0 0.0
        %1631 = vmatprep.subr.mxu0 0.0
        %1632 = vmatpush1.msra.mxu0 0.0
        %1633 = vmatprep.subr.mxu0 0.0
        %1634 = vmatpush1.msra.mxu0 0.0
        %1635 = vmatprep.subr.mxu0 0.0
        %1636 = vmatpush1.msra.mxu0 0.0
        %1637 = vmatprep.subr.mxu0 0.0
        %1638 = vmatpush1.msra.mxu0 0.0
        %1639 = vmatprep.mubr.f32.mxu0 0.0
        %1640 = vmatmul.mubr.f32.gmra.mrb[0].mxu0 %v1573
        %v1641 = vpop.f32.mrb[0].mxu0
        %v1642 = vadd.f32 0.0, %v1641
        %v1643 = vpop.f32.mrb[0].mxu0
        %1644 = vdwg.mxu0
        %s1645 = scalar_lea.vmem %s2, 16
        %v1646 = vld [vmem:[%s1645] sm:$0xff]
        %v1648 = vsel %vm494, %v1566, 0
        %v1651 = vsel %vm494, %v1642, 0
        %1653 = vmatprep.subr.mxu0 0.0
        %1654 = vmatpush1.msra.mxu0 %v1646
        %1655 = vmatprep.subr.mxu0 0.0
        %1656 = vmatpush1.msra.mxu0 0.0
        %1657 = vmatprep.subr.mxu0 0.0
        %1658 = vmatpush1.msra.mxu0 0.0
        %1659 = vmatprep.subr.mxu0 0.0
        %1660 = vmatpush1.msra.mxu0 0.0
        %1661 = vmatprep.subr.mxu0 0.0
        %1662 = vmatpush1.msra.mxu0 0.0
        %1663 = vmatprep.subr.mxu0 0.0
        %1664 = vmatpush1.msra.mxu0 0.0
        %1665 = vmatprep.subr.mxu0 0.0
        %1666 = vmatpush1.msra.mxu0 0.0
        %1667 = vmatprep.subr.mxu0 0.0
        %1668 = vmatpush1.msra.mxu0 0.0
        %1669 = vmatprep.subr.mxu0 0.0
        %1670 = vmatpush1.msra.mxu0 0.0
        %1671 = vmatprep.subr.mxu0 0.0
        %1672 = vmatpush1.msra.mxu0 0.0
        %1673 = vmatprep.subr.mxu0 0.0
        %1674 = vmatpush1.msra.mxu0 0.0
        %1675 = vmatprep.subr.mxu0 0.0
        %1676 = vmatpush1.msra.mxu0 0.0
        %1677 = vmatprep.subr.mxu0 0.0
        %1678 = vmatpush1.msra.mxu0 0.0
        %1679 = vmatprep.subr.mxu0 0.0
        %1680 = vmatpush1.msra.mxu0 0.0
        %1681 = vmatprep.subr.mxu0 0.0
        %1682 = vmatpush1.msra.mxu0 0.0
        %1683 = vmatprep.subr.mxu0 0.0
        %1684 = vmatpush1.msra.mxu0 0.0
        %1685 = vmatprep.subr.mxu0 0.0
        %1686 = vmatpush1.msra.mxu0 0.0
        %1687 = vmatprep.subr.mxu0 0.0
        %1688 = vmatpush1.msra.mxu0 0.0
        %1689 = vmatprep.subr.mxu0 0.0
        %1690 = vmatpush1.msra.mxu0 0.0
        %1691 = vmatprep.subr.mxu0 0.0
        %1692 = vmatpush1.msra.mxu0 0.0
        %1693 = vmatprep.subr.mxu0 0.0
        %1694 = vmatpush1.msra.mxu0 0.0
        %1695 = vmatprep.subr.mxu0 0.0
        %1696 = vmatpush1.msra.mxu0 0.0
        %1697 = vmatprep.subr.mxu0 0.0
        %1698 = vmatpush1.msra.mxu0 0.0
        %1699 = vmatprep.subr.mxu0 0.0
        %1700 = vmatpush1.msra.mxu0 0.0
        %1701 = vmatprep.subr.mxu0 0.0
        %1702 = vmatpush1.msra.mxu0 0.0
        %1703 = vmatprep.subr.mxu0 0.0
        %1704 = vmatpush1.msra.mxu0 0.0
        %1705 = vmatprep.subr.mxu0 0.0
        %1706 = vmatpush1.msra.mxu0 0.0
        %1707 = vmatprep.subr.mxu0 0.0
        %1708 = vmatpush1.msra.mxu0 0.0
        %1709 = vmatprep.subr.mxu0 0.0
        %1710 = vmatpush1.msra.mxu0 0.0
        %1711 = vmatprep.subr.mxu0 0.0
        %1712 = vmatpush1.msra.mxu0 0.0
        %1713 = vmatprep.subr.mxu0 0.0
        %1714 = vmatpush1.msra.mxu0 0.0
        %1715 = vmatprep.subr.mxu0 0.0
        %1716 = vmatpush1.msra.mxu0 0.0
        %1717 = vmatprep.mubr.f32.mxu0 0.0
        %1718 = vmatmul.mubr.f32.gmra.mrb[0].mxu0 %v1648
        %v1719 = vpop.f32.mrb[0].mxu0
        %v1720 = vadd.f32 0.0, %v1719
        %v1721 = vpop.f32.mrb[0].mxu0
        %1722 = vmatprep.mubr.f32.mxu0 0.0
        %1723 = vmatmul.mubr.f32.gmra.mrb[0].mxu0 %v1651
        %v1724 = vpop.f32.mrb[0].mxu0
        %v1725 = vadd.f32 0.0, %v1724
        %v1726 = vpop.f32.mrb[0].mxu0
        %1727 = vdwg.mxu0
        %v1728 = vadd.f32 %v1307, %v1720
        %v1729 = vadd.f32 %v1312, %v1725
        %1730 = vrot.lane.b32.xlu0 %v483, 104
        %v1731 = vpop.permute.xlu0 %1730
        %1732 = vrot.lane.b32.xlu0 %v483, 72
        %v1733 = vpop.permute.xlu0 %1732
        %v1734 = vsel %vm494, %v1731, 0
        %v1736 = vsel %vm494, %v1733, 0
        %1738 = vmatprep.subr.mxu0 0.0
        %1739 = vmatpush1.xpose.msra.mxu0 %v1736
        %1740 = vmatprep.subr.mxu0 0.0
        %1741 = vmatpush1.xpose.msra.mxu0 0.0
        %1742 = vmatprep.subr.mxu0 0.0
        %1743 = vmatpush1.xpose.msra.mxu0 0.0
        %1744 = vmatprep.subr.mxu0 0.0
        %1745 = vmatpush1.xpose.msra.mxu0 0.0
        %1746 = vmatprep.subr.mxu0 0.0
        %1747 = vmatpush1.xpose.msra.mxu0 0.0
        %1748 = vmatprep.subr.mxu0 0.0
        %1749 = vmatpush1.xpose.msra.mxu0 0.0
        %1750 = vmatprep.subr.mxu0 0.0
        %1751 = vmatpush1.xpose.msra.mxu0 0.0
        %1752 = vmatprep.subr.mxu0 0.0
        %1753 = vmatpush1.xpose.msra.mxu0 0.0
        %1754 = vmatprep.subr.mxu0 0.0
        %1755 = vmatpush1.xpose.msra.mxu0 0.0
        %1756 = vmatprep.subr.mxu0 0.0
        %1757 = vmatpush1.xpose.msra.mxu0 0.0
        %1758 = vmatprep.subr.mxu0 0.0
        %1759 = vmatpush1.xpose.msra.mxu0 0.0
        %1760 = vmatprep.subr.mxu0 0.0
        %1761 = vmatpush1.xpose.msra.mxu0 0.0
        %1762 = vmatprep.subr.mxu0 0.0
        %1763 = vmatpush1.xpose.msra.mxu0 0.0
        %1764 = vmatprep.subr.mxu0 0.0
        %1765 = vmatpush1.xpose.msra.mxu0 0.0
        %1766 = vmatprep.subr.mxu0 0.0
        %1767 = vmatpush1.xpose.msra.mxu0 0.0
        %1768 = vmatprep.subr.mxu0 0.0
        %1769 = vmatpush1.xpose.msra.mxu0 0.0
        %1770 = vmatprep.subr.mxu0 0.0
        %1771 = vmatpush1.xpose.msra.mxu0 0.0
        %1772 = vmatprep.subr.mxu0 0.0
        %1773 = vmatpush1.xpose.msra.mxu0 0.0
        %1774 = vmatprep.subr.mxu0 0.0
        %1775 = vmatpush1.xpose.msra.mxu0 0.0
        %1776 = vmatprep.subr.mxu0 0.0
        %1777 = vmatpush1.xpose.msra.mxu0 0.0
        %1778 = vmatprep.subr.mxu0 0.0
        %1779 = vmatpush1.xpose.msra.mxu0 0.0
        %1780 = vmatprep.subr.mxu0 0.0
        %1781 = vmatpush1.xpose.msra.mxu0 0.0
        %1782 = vmatprep.subr.mxu0 0.0
        %1783 = vmatpush1.xpose.msra.mxu0 0.0
        %1784 = vmatprep.subr.mxu0 0.0
        %1785 = vmatpush1.xpose.msra.mxu0 0.0
        %1786 = vmatprep.subr.mxu0 0.0
        %1787 = vmatpush1.xpose.msra.mxu0 0.0
        %1788 = vmatprep.subr.mxu0 0.0
        %1789 = vmatpush1.xpose.msra.mxu0 0.0
        %1790 = vmatprep.subr.mxu0 0.0
        %1791 = vmatpush1.xpose.msra.mxu0 0.0
        %1792 = vmatprep.subr.mxu0 0.0
        %1793 = vmatpush1.xpose.msra.mxu0 0.0
        %1794 = vmatprep.subr.mxu0 0.0
        %1795 = vmatpush1.xpose.msra.mxu0 0.0
        %1796 = vmatprep.subr.mxu0 0.0
        %1797 = vmatpush1.xpose.msra.mxu0 0.0
        %1798 = vmatprep.subr.mxu0 0.0
        %1799 = vmatpush1.xpose.msra.mxu0 0.0
        %1800 = vmatprep.subr.mxu0 0.0
        %1801 = vmatpush1.xpose.msra.mxu0 0.0
        %1802 = vmatprep.mubr.f32.mxu0 0.0
        %1803 = vmatmul.mubr.f32.gmra.mrb[0].mxu0 %v1734
        %v1804 = vpop.f32.mrb[0].mxu0
        %v1805 = vadd.f32 0.0, %v1804
        %v1806 = vpop.f32.mrb[0].mxu0
        %1807 = vdwg.mxu0
        %1808 = vrot.lane.b32.xlu0 %v488, 104
        %v1809 = vpop.permute.xlu0 %1808
        %1810 = vrot.lane.b32.xlu0 %v488, 72
        %v1811 = vpop.permute.xlu0 %1810
        %v1812 = vsel %vm494, %v1809, 0
        %v1814 = vsel %vm494, %v1811, 0
        %1816 = vmatprep.subr.mxu0 0.0
        %1817 = vmatpush1.xpose.msra.mxu0 %v1814
        %1818 = vmatprep.subr.mxu0 0.0
        %1819 = vmatpush1.xpose.msra.mxu0 0.0
        %1820 = vmatprep.subr.mxu0 0.0
        %1821 = vmatpush1.xpose.msra.mxu0 0.0
        %1822 = vmatprep.subr.mxu0 0.0
        %1823 = vmatpush1.xpose.msra.mxu0 0.0
        %1824 = vmatprep.subr.mxu0 0.0
        %1825 = vmatpush1.xpose.msra.mxu0 0.0
        %1826 = vmatprep.subr.mxu0 0.0
        %1827 = vmatpush1.xpose.msra.mxu0 0.0
        %1828 = vmatprep.subr.mxu0 0.0
        %1829 = vmatpush1.xpose.msra.mxu0 0.0
        %1830 = vmatprep.subr.mxu0 0.0
        %1831 = vmatpush1.xpose.msra.mxu0 0.0
        %1832 = vmatprep.subr.mxu0 0.0
        %1833 = vmatpush1.xpose.msra.mxu0 0.0
        %1834 = vmatprep.subr.mxu0 0.0
        %1835 = vmatpush1.xpose.msra.mxu0 0.0
        %1836 = vmatprep.subr.mxu0 0.0
        %1837 = vmatpush1.xpose.msra.mxu0 0.0
        %1838 = vmatprep.subr.mxu0 0.0
        %1839 = vmatpush1.xpose.msra.mxu0 0.0
        %1840 = vmatprep.subr.mxu0 0.0
        %1841 = vmatpush1.xpose.msra.mxu0 0.0
        %1842 = vmatprep.subr.mxu0 0.0
        %1843 = vmatpush1.xpose.msra.mxu0 0.0
        %1844 = vmatprep.subr.mxu0 0.0
        %1845 = vmatpush1.xpose.msra.mxu0 0.0
        %1846 = vmatprep.subr.mxu0 0.0
        %1847 = vmatpush1.xpose.msra.mxu0 0.0
        %1848 = vmatprep.subr.mxu0 0.0
        %1849 = vmatpush1.xpose.msra.mxu0 0.0
        %1850 = vmatprep.subr.mxu0 0.0
        %1851 = vmatpush1.xpose.msra.mxu0 0.0
        %1852 = vmatprep.subr.mxu0 0.0
        %1853 = vmatpush1.xpose.msra.mxu0 0.0
        %1854 = vmatprep.subr.mxu0 0.0
        %1855 = vmatpush1.xpose.msra.mxu0 0.0
        %1856 = vmatprep.subr.mxu0 0.0
        %1857 = vmatpush1.xpose.msra.mxu0 0.0
        %1858 = vmatprep.subr.mxu0 0.0
        %1859 = vmatpush1.xpose.msra.mxu0 0.0
        %1860 = vmatprep.subr.mxu0 0.0
        %1861 = vmatpush1.xpose.msra.mxu0 0.0
        %1862 = vmatprep.subr.mxu0 0.0
        %1863 = vmatpush1.xpose.msra.mxu0 0.0
        %1864 = vmatprep.subr.mxu0 0.0
        %1865 = vmatpush1.xpose.msra.mxu0 0.0
        %1866 = vmatprep.subr.mxu0 0.0
        %1867 = vmatpush1.xpose.msra.mxu0 0.0
        %1868 = vmatprep.subr.mxu0 0.0
        %1869 = vmatpush1.xpose.msra.mxu0 0.0
        %1870 = vmatprep.subr.mxu0 0.0
        %1871 = vmatpush1.xpose.msra.mxu0 0.0
        %1872 = vmatprep.subr.mxu0 0.0
        %1873 = vmatpush1.xpose.msra.mxu0 0.0
        %1874 = vmatprep.subr.mxu0 0.0
        %1875 = vmatpush1.xpose.msra.mxu0 0.0
        %1876 = vmatprep.subr.mxu0 0.0
        %1877 = vmatpush1.xpose.msra.mxu0 0.0
        %1878 = vmatprep.subr.mxu0 0.0
        %1879 = vmatpush1.xpose.msra.mxu0 0.0
        %1880 = vmatprep.mubr.f32.mxu0 0.0
        %1881 = vmatmul.mubr.f32.gmra.mrb[0].mxu0 %v1812
        %v1882 = vpop.f32.mrb[0].mxu0
        %v1883 = vadd.f32 0.0, %v1882
        %v1884 = vpop.f32.mrb[0].mxu0
        %1885 = vdwg.mxu0
        %v1886 = vsel %vm494, %v1805, -inf
        %1887 = vmax.xlane.f32.xlu0 %v1886
        %v1888 = vpop.xlane.xlu0 %1887
        %v1889 = vsel %vm494, %v1883, -inf
        %1890 = vmax.xlane.f32.xlu0 %v1889
        %v1891 = vpop.xlane.xlu0 %1890
        %v1892 = vsub.f32 %v1805, %v1888
        %v1893 = vsub.f32 %v1883, %v1891
        %v1894 = vmul.f32 %v1892, 1.442695
        %v1895 = vpow.pop %v1894
        %v1896 = vmul.f32 %v1893, 1.442695
        %v1897 = vpow.pop %v1896
        %v1898 = vsel %vm494, %v1895, 0.0
        %1899 = vadd.xlane.f32.xlu0 %v1898
        %v1900 = vpop.xlane.xlu0 %1899
        %v1901 = vsel %vm494, %v1897, 0.0
        %1902 = vadd.xlane.f32.xlu0 %v1901
        %v1903 = vpop.xlane.xlu0 %1902
        %v1904 = vrcp.pop %v1900
        %v1905 = vrcp.pop %v1903
        %v1906 = vmul.f32 %v1895, %v1904
        %v1907 = vmul.f32 %v1897, %v1905
        %1908 = vrot.lane.b32.xlu0 %v483, 40
        %v1909 = vpop.permute.xlu0 %1908
        %v1912 = vsel %vm494, %v1906, 0
        %1914 = vmatprep.subr.mxu0 0.0
        %1915 = vmatpush1.msra.mxu0 %v1909
        %1916 = vmatprep.subr.mxu0 0.0
        %1917 = vmatpush1.msra.mxu0 0.0
        %1918 = vmatprep.subr.mxu0 0.0
        %1919 = vmatpush1.msra.mxu0 0.0
        %1920 = vmatprep.subr.mxu0 0.0
        %1921 = vmatpush1.msra.mxu0 0.0
        %1922 = vmatprep.subr.mxu0 0.0
        %1923 = vmatpush1.msra.mxu0 0.0
        %1924 = vmatprep.subr.mxu0 0.0
        %1925 = vmatpush1.msra.mxu0 0.0
        %1926 = vmatprep.subr.mxu0 0.0
        %1927 = vmatpush1.msra.mxu0 0.0
        %1928 = vmatprep.subr.mxu0 0.0
        %1929 = vmatpush1.msra.mxu0 0.0
        %1930 = vmatprep.subr.mxu0 0.0
        %1931 = vmatpush1.msra.mxu0 0.0
        %1932 = vmatprep.subr.mxu0 0.0
        %1933 = vmatpush1.msra.mxu0 0.0
        %1934 = vmatprep.subr.mxu0 0.0
        %1935 = vmatpush1.msra.mxu0 0.0
        %1936 = vmatprep.subr.mxu0 0.0
        %1937 = vmatpush1.msra.mxu0 0.0
        %1938 = vmatprep.subr.mxu0 0.0
        %1939 = vmatpush1.msra.mxu0 0.0
        %1940 = vmatprep.subr.mxu0 0.0
        %1941 = vmatpush1.msra.mxu0 0.0
        %1942 = vmatprep.subr.mxu0 0.0
        %1943 = vmatpush1.msra.mxu0 0.0
        %1944 = vmatprep.subr.mxu0 0.0
        %1945 = vmatpush1.msra.mxu0 0.0
        %1946 = vmatprep.subr.mxu0 0.0
        %1947 = vmatpush1.msra.mxu0 0.0
        %1948 = vmatprep.subr.mxu0 0.0
        %1949 = vmatpush1.msra.mxu0 0.0
        %1950 = vmatprep.subr.mxu0 0.0
        %1951 = vmatpush1.msra.mxu0 0.0
        %1952 = vmatprep.subr.mxu0 0.0
        %1953 = vmatpush1.msra.mxu0 0.0
        %1954 = vmatprep.subr.mxu0 0.0
        %1955 = vmatpush1.msra.mxu0 0.0
        %1956 = vmatprep.subr.mxu0 0.0
        %1957 = vmatpush1.msra.mxu0 0.0
        %1958 = vmatprep.subr.mxu0 0.0
        %1959 = vmatpush1.msra.mxu0 0.0
        %1960 = vmatprep.subr.mxu0 0.0
        %1961 = vmatpush1.msra.mxu0 0.0
        %1962 = vmatprep.subr.mxu0 0.0
        %1963 = vmatpush1.msra.mxu0 0.0
        %1964 = vmatprep.subr.mxu0 0.0
        %1965 = vmatpush1.msra.mxu0 0.0
        %1966 = vmatprep.subr.mxu0 0.0
        %1967 = vmatpush1.msra.mxu0 0.0
        %1968 = vmatprep.subr.mxu0 0.0
        %1969 = vmatpush1.msra.mxu0 0.0
        %1970 = vmatprep.subr.mxu0 0.0
        %1971 = vmatpush1.msra.mxu0 0.0
        %1972 = vmatprep.subr.mxu0 0.0
        %1973 = vmatpush1.msra.mxu0 0.0
        %1974 = vmatprep.subr.mxu0 0.0
        %1975 = vmatpush1.msra.mxu0 0.0
        %1976 = vmatprep.subr.mxu0 0.0
        %1977 = vmatpush1.msra.mxu0 0.0
        %1978 = vmatprep.mubr.f32.mxu0 0.0
        %1979 = vmatmul.mubr.f32.gmra.mrb[0].mxu0 %v1912
        %v1980 = vpop.f32.mrb[0].mxu0
        %v1981 = vadd.f32 0.0, %v1980
        %v1982 = vpop.f32.mrb[0].mxu0
        %1983 = vdwg.mxu0
        %1984 = vrot.lane.b32.xlu0 %v488, 40
        %v1985 = vpop.permute.xlu0 %1984
        %v1988 = vsel %vm494, %v1907, 0
        %1990 = vmatprep.subr.mxu0 0.0
        %1991 = vmatpush1.msra.mxu0 %v1985
        %1992 = vmatprep.subr.mxu0 0.0
        %1993 = vmatpush1.msra.mxu0 0.0
        %1994 = vmatprep.subr.mxu0 0.0
        %1995 = vmatpush1.msra.mxu0 0.0
        %1996 = vmatprep.subr.mxu0 0.0
        %1997 = vmatpush1.msra.mxu0 0.0
        %1998 = vmatprep.subr.mxu0 0.0
        %1999 = vmatpush1.msra.mxu0 0.0
        %2000 = vmatprep.subr.mxu0 0.0
        %2001 = vmatpush1.msra.mxu0 0.0
        %2002 = vmatprep.subr.mxu0 0.0
        %2003 = vmatpush1.msra.mxu0 0.0
        %2004 = vmatprep.subr.mxu0 0.0
        %2005 = vmatpush1.msra.mxu0 0.0
        %2006 = vmatprep.subr.mxu0 0.0
        %2007 = vmatpush1.msra.mxu0 0.0
        %2008 = vmatprep.subr.mxu0 0.0
        %2009 = vmatpush1.msra.mxu0 0.0
        %2010 = vmatprep.subr.mxu0 0.0
        %2011 = vmatpush1.msra.mxu0 0.0
        %2012 = vmatprep.subr.mxu0 0.0
        %2013 = vmatpush1.msra.mxu0 0.0
        %2014 = vmatprep.subr.mxu0 0.0
        %2015 = vmatpush1.msra.mxu0 0.0
        %2016 = vmatprep.subr.mxu0 0.0
        %2017 = vmatpush1.msra.mxu0 0.0
        %2018 = vmatprep.subr.mxu0 0.0
        %2019 = vmatpush1.msra.mxu0 0.0
        %2020 = vmatprep.subr.mxu0 0.0
        %2021 = vmatpush1.msra.mxu0 0.0
        %2022 = vmatprep.subr.mxu0 0.0
        %2023 = vmatpush1.msra.mxu0 0.0
        %2024 = vmatprep.subr.mxu0 0.0
        %2025 = vmatpush1.msra.mxu0 0.0
        %2026 = vmatprep.subr.mxu0 0.0
        %2027 = vmatpush1.msra.mxu0 0.0
        %2028 = vmatprep.subr.mxu0 0.0
        %2029 = vmatpush1.msra.mxu0 0.0
        %2030 = vmatprep.subr.mxu0 0.0
        %2031 = vmatpush1.msra.mxu0 0.0
        %2032 = vmatprep.subr.mxu0 0.0
        %2033 = vmatpush1.msra.mxu0 0.0
        %2034 = vmatprep.subr.mxu0 0.0
        %2035 = vmatpush1.msra.mxu0 0.0
        %2036 = vmatprep.subr.mxu0 0.0
        %2037 = vmatpush1.msra.mxu0 0.0
        %2038 = vmatprep.subr.mxu0 0.0
        %2039 = vmatpush1.msra.mxu0 0.0
        %2040 = vmatprep.subr.mxu0 0.0
        %2041 = vmatpush1.msra.mxu0 0.0
        %2042 = vmatprep.subr.mxu0 0.0
        %2043 = vmatpush1.msra.mxu0 0.0
        %2044 = vmatprep.subr.mxu0 0.0
        %2045 = vmatpush1.msra.mxu0 0.0
        %2046 = vmatprep.subr.mxu0 0.0
        %2047 = vmatpush1.msra.mxu0 0.0
        %2048 = vmatprep.subr.mxu0 0.0
        %2049 = vmatpush1.msra.mxu0 0.0
        %2050 = vmatprep.subr.mxu0 0.0
        %2051 = vmatpush1.msra.mxu0 0.0
        %2052 = vmatprep.subr.mxu0 0.0
        %2053 = vmatpush1.msra.mxu0 0.0
        %2054 = vmatprep.mubr.f32.mxu0 0.0
        %2055 = vmatmul.mubr.f32.gmra.mrb[0].mxu0 %v1988
        %v2056 = vpop.f32.mrb[0].mxu0
        %v2057 = vadd.f32 0.0, %v2056
        %v2058 = vpop.f32.mrb[0].mxu0
        %2059 = vdwg.mxu0
        %s2060 = scalar_lea.vmem %s2, 24
        %v2061 = vld [vmem:[%s2060] sm:$0xff]
        %v2063 = vsel %vm494, %v1981, 0
        %v2066 = vsel %vm494, %v2057, 0
        %2068 = vmatprep.subr.mxu0 0.0
        %2069 = vmatpush1.msra.mxu0 %v2061
        %2070 = vmatprep.subr.mxu0 0.0
        %2071 = vmatpush1.msra.mxu0 0.0
        %2072 = vmatprep.subr.mxu0 0.0
        %2073 = vmatpush1.msra.mxu0 0.0
        %2074 = vmatprep.subr.mxu0 0.0
        %2075 = vmatpush1.msra.mxu0 0.0
        %2076 = vmatprep.subr.mxu0 0.0
        %2077 = vmatpush1.msra.mxu0 0.0
        %2078 = vmatprep.subr.mxu0 0.0
        %2079 = vmatpush1.msra.mxu0 0.0
        %2080 = vmatprep.subr.mxu0 0.0
        %2081 = vmatpush1.msra.mxu0 0.0
        %2082 = vmatprep.subr.mxu0 0.0
        %2083 = vmatpush1.msra.mxu0 0.0
        %2084 = vmatprep.subr.mxu0 0.0
        %2085 = vmatpush1.msra.mxu0 0.0
        %2086 = vmatprep.subr.mxu0 0.0
        %2087 = vmatpush1.msra.mxu0 0.0
        %2088 = vmatprep.subr.mxu0 0.0
        %2089 = vmatpush1.msra.mxu0 0.0
        %2090 = vmatprep.subr.mxu0 0.0
        %2091 = vmatpush1.msra.mxu0 0.0
        %2092 = vmatprep.subr.mxu0 0.0
        %2093 = vmatpush1.msra.mxu0 0.0
        %2094 = vmatprep.subr.mxu0 0.0
        %2095 = vmatpush1.msra.mxu0 0.0
        %2096 = vmatprep.subr.mxu0 0.0
        %2097 = vmatpush1.msra.mxu0 0.0
        %2098 = vmatprep.subr.mxu0 0.0
        %2099 = vmatpush1.msra.mxu0 0.0
        %2100 = vmatprep.subr.mxu0 0.0
        %2101 = vmatpush1.msra.mxu0 0.0
        %2102 = vmatprep.subr.mxu0 0.0
        %2103 = vmatpush1.msra.mxu0 0.0
        %2104 = vmatprep.subr.mxu0 0.0
        %2105 = vmatpush1.msra.mxu0 0.0
        %2106 = vmatprep.subr.mxu0 0.0
        %2107 = vmatpush1.msra.mxu0 0.0
        %2108 = vmatprep.subr.mxu0 0.0
        %2109 = vmatpush1.msra.mxu0 0.0
        %2110 = vmatprep.subr.mxu0 0.0
        %2111 = vmatpush1.msra.mxu0 0.0
        %2112 = vmatprep.subr.mxu0 0.0
        %2113 = vmatpush1.msra.mxu0 0.0
        %2114 = vmatprep.subr.mxu0 0.0
        %2115 = vmatpush1.msra.mxu0 0.0
        %2116 = vmatprep.subr.mxu0 0.0
        %2117 = vmatpush1.msra.mxu0 0.0
        %2118 = vmatprep.subr.mxu0 0.0
        %2119 = vmatpush1.msra.mxu0 0.0
        %2120 = vmatprep.subr.mxu0 0.0
        %2121 = vmatpush1.msra.mxu0 0.0
        %2122 = vmatprep.subr.mxu0 0.0
        %2123 = vmatpush1.msra.mxu0 0.0
        %2124 = vmatprep.subr.mxu0 0.0
        %2125 = vmatpush1.msra.mxu0 0.0
        %2126 = vmatprep.subr.mxu0 0.0
        %2127 = vmatpush1.msra.mxu0 0.0
        %2128 = vmatprep.subr.mxu0 0.0
        %2129 = vmatpush1.msra.mxu0 0.0
        %2130 = vmatprep.subr.mxu0 0.0
        %2131 = vmatpush1.msra.mxu0 0.0
        %2132 = vmatprep.mubr.f32.mxu0 0.0
        %2133 = vmatmul.mubr.f32.gmra.mrb[0].mxu0 %v2063
        %v2134 = vpop.f32.mrb[0].mxu0
        %v2135 = vadd.f32 0.0, %v2134
        %v2136 = vpop.f32.mrb[0].mxu0
        %2137 = vmatprep.mubr.f32.mxu0 0.0
        %2138 = vmatmul.mubr.f32.gmra.mrb[0].mxu0 %v2066
        %v2139 = vpop.f32.mrb[0].mxu0
        %v2140 = vadd.f32 0.0, %v2139
        %v2141 = vpop.f32.mrb[0].mxu0
        %2142 = vdwg.mxu0
        %v2143 = vadd.f32 %v1728, %v2135
        %v2144 = vadd.f32 %v1729, %v2140
        %v2145 = vadd.f32 %v2143, %v403
        %v2146 = vadd.f32 %v2144, %v404
        %v2147 = vld [vmem:[%s3] sm:$0x1]
        %v2148 = vld [vmem:[%s4] sm:$0x1]
        %v2149 = vsel %vm409, %v2145, 0.0
        %2150 = vadd.xlane.f32.xlu0 %v2149
        %v2151 = vpop.xlane.xlu0 %2150
        %v2152 = vsel %vm409, %v2146, 0.0
        %2153 = vadd.xlane.f32.xlu0 %v2152
        %v2154 = vpop.xlane.xlu0 %2153
        %v2155 = vrcp.pop 32.0
        %v2156 = vmul.f32 %v2151, %v2155
        %v2157 = vmul.f32 %v2154, %v2155
        %v2158 = vsub.f32 %v2145, %v2156
        %v2159 = vsub.f32 %v2146, %v2157
        %v2160 = vmul.f32 %v2158, %v2158
        %v2161 = vmul.f32 %v2159, %v2159
        %v2162 = vsel %vm409, %v2160, 0.0
        %2163 = vadd.xlane.f32.xlu0 %v2162
        %v2164 = vpop.xlane.xlu0 %2163
        %v2165 = vsel %vm409, %v2161, 0.0
        %2166 = vadd.xlane.f32.xlu0 %v2165
        %v2167 = vpop.xlane.xlu0 %2166
        %v2168 = vmul.f32 %v2164, %v2155
        %v2169 = vmul.f32 %v2167, %v2155
        %v2170 = vadd.f32 %v2168, 1e-05
        %v2171 = vadd.f32 %v2169, 1e-05
        %v2172 = vrsqrt.pop %v2170
        %v2173 = vrsqrt.pop %v2171
        %v2174 = vmul.f32 %v2158, %v2172
        %v2175 = vmul.f32 %v2159, %v2173
        %v2177 = vlaneseq
        %v2178 = vshrl.u32 %v2177, 7
        %v2179 = vsub.s32 0, %v2178
        %v2180 = vrot.slane %v2147, %v2179
        %v2182 = vmul.f32 %v2174, %v2180
        %v2183 = vmul.f32 %v2175, %v2180
        %v2185 = vlaneseq
        %v2186 = vshrl.u32 %v2185, 7
        %v2187 = vsub.s32 0, %v2186
        %v2188 = vrot.slane %v2148, %v2187
        %v2190 = vadd.f32 %v2182, %v2188
        %v2191 = vadd.f32 %v2183, %v2188
        %v2192 = vld [vmem:[#allocation2] sm:$0xff]
        %v2193 = vld [vmem:[#allocation2 + $0x8] sm:$0xff]
        %v2194 = vld [vmem:[#allocation2 + $0x10] sm:$0xff]
        %v2195 = vld [vmem:[#allocation2 + $0x18] sm:$0xff]
        %v2196 = vld [vmem:[%s6] sm:$0x1]
        %v2198 = vlaneseq
        %v2199 = vshrl.u32 %v2198, 7
        %v2200 = vsub.s32 0, %v2199
        %v2201 = vrot.slane %v2196, %v2200
        %v2204 = vsel %vm409, %v2190, 0
        %v2207 = vsel %vm409, %v2191, 0
        %2209 = vmatprep.subr.mxu0 0.0
        %2210 = vmatpush1.msra.mxu0 %v2192
        %2211 = vmatprep.subr.mxu0 0.0
        %2212 = vmatpush1.msra.mxu0 %v2193
        %2213 = vmatprep.subr.mxu0 0.0
        %2214 = vmatpush1.msra.mxu0 %v2194
        %2215 = vmatprep.subr.mxu0 0.0
        %2216 = vmatpush1.msra.mxu0 %v2195
        %2217 = vmatprep.subr.mxu0 0.0
        %2218 = vmatpush1.msra.mxu0 0.0
        %2219 = vmatprep.subr.mxu0 0.0
        %2220 = vmatpush1.msra.mxu0 0.0
        %2221 = vmatprep.subr.mxu0 0.0
        %2222 = vmatpush1.msra.mxu0 0.0
        %2223 = vmatprep.subr.mxu0 0.0
        %2224 = vmatpush1.msra.mxu0 0.0
        %2225 = vmatprep.subr.mxu0 0.0
        %2226 = vmatpush1.msra.mxu0 0.0
        %2227 = vmatprep.subr.mxu0 0.0
        %2228 = vmatpush1.msra.mxu0 0.0
        %2229 = vmatprep.subr.mxu0 0.0
        %2230 = vmatpush1.msra.mxu0 0.0
        %2231 = vmatprep.subr.mxu0 0.0
        %2232 = vmatpush1.msra.mxu0 0.0
        %2233 = vmatprep.subr.mxu0 0.0
        %2234 = vmatpush1.msra.mxu0 0.0
        %2235 = vmatprep.subr.mxu0 0.0
        %2236 = vmatpush1.msra.mxu0 0.0
        %2237 = vmatprep.subr.mxu0 0.0
        %2238 = vmatpush1.msra.mxu0 0.0
        %2239 = vmatprep.subr.mxu0 0.0
        %2240 = vmatpush1.msra.mxu0 0.0
        %2241 = vmatprep.subr.mxu0 0.0
        %2242 = vmatpush1.msra.mxu0 0.0
        %2243 = vmatprep.subr.mxu0 0.0
        %2244 = vmatpush1.msra.mxu0 0.0
        %2245 = vmatprep.subr.mxu0 0.0
        %2246 = vmatpush1.msra.mxu0 0.0
        %2247 = vmatprep.subr.mxu0 0.0
        %2248 = vmatpush1.msra.mxu0 0.0
        %2249 = vmatprep.subr.mxu0 0.0
        %2250 = vmatpush1.msra.mxu0 0.0
        %2251 = vmatprep.subr.mxu0 0.0
        %2252 = vmatpush1.msra.mxu0 0.0
        %2253 = vmatprep.subr.mxu0 0.0
        %2254 = vmatpush1.msra.mxu0 0.0
        %2255 = vmatprep.subr.mxu0 0.0
        %2256 = vmatpush1.msra.mxu0 0.0
        %2257 = vmatprep.subr.mxu0 0.0
        %2258 = vmatpush1.msra.mxu0 0.0
        %2259 = vmatprep.subr.mxu0 0.0
        %2260 = vmatpush1.msra.mxu0 0.0
        %2261 = vmatprep.subr.mxu0 0.0
        %2262 = vmatpush1.msra.mxu0 0.0
        %2263 = vmatprep.subr.mxu0 0.0
        %2264 = vmatpush1.msra.mxu0 0.0
        %2265 = vmatprep.subr.mxu0 0.0
        %2266 = vmatpush1.msra.mxu0 0.0
        %2267 = vmatprep.subr.mxu0 0.0
        %2268 = vmatpush1.msra.mxu0 0.0
        %2269 = vmatprep.subr.mxu0 0.0
        %2270 = vmatpush1.msra.mxu0 0.0
        %2271 = vmatprep.subr.mxu0 0.0
        %2272 = vmatpush1.msra.mxu0 0.0
        %2273 = vmatprep.mubr.f32.mxu0 0.0
        %2274 = vmatmul.mubr.f32.gmra.mrb[0].mxu0 %v2204
        %v2275 = vpop.f32.mrb[0].mxu0
        %v2276 = vadd.f32 %v2201, %v2275
        %v2277 = vpop.f32.mrb[0].mxu0
        %2278 = vmatprep.mubr.f32.mxu0 0.0
        %2279 = vmatmul.mubr.f32.gmra.mrb[0].mxu0 %v2207
        %v2280 = vpop.f32.mrb[0].mxu0
        %v2281 = vadd.f32 %v2201, %v2280
        %v2282 = vpop.f32.mrb[0].mxu0
        %2283 = vdwg.mxu0
        %v2284 = vmax.f32 %v2276, 0.0
        %v2285 = vmax.f32 %v2281, 0.0
        %v2286 = vld [vmem:[%s7] sm:$0xff]
        %v2287 = vld [vmem:[%s7 + $0x8] sm:$0xff]
        %v2288 = vld [vmem:[%s7 + $0x10] sm:$0xff]
        %v2289 = vld [vmem:[%s7 + $0x18] sm:$0xff]
        %v2290 = vld [vmem:[%s7 + $0x20] sm:$0xff]
        %v2291 = vld [vmem:[%s7 + $0x28] sm:$0xff]
        %v2292 = vld [vmem:[%s7 + $0x30] sm:$0xff]
        %v2293 = vld [vmem:[%s7 + $0x38] sm:$0xff]
        %v2294 = vld [vmem:[%s8] sm:$0x1]
        %v2296 = vlaneseq
        %v2297 = vshrl.u32 %v2296, 7
        %v2298 = vsub.s32 0, %v2297
        %v2299 = vrot.slane %v2294, %v2298
        %vm2301 = vcmask 523264
        %v2303 = vsel %vm2301, %v2284, 0
        %v2306 = vsel %vm2301, %v2285, 0
        %2308 = vmatprep.subr.mxu0 0.0
        %2309 = vmatpush1.msra.mxu0 %v2286
        %2310 = vmatprep.subr.mxu0 0.0
        %2311 = vmatpush1.msra.mxu0 %v2287
        %2312 = vmatprep.subr.mxu0 0.0
        %2313 = vmatpush1.msra.mxu0 %v2288
        %2314 = vmatprep.subr.mxu0 0.0
        %2315 = vmatpush1.msra.mxu0 %v2289
        %2316 = vmatprep.subr.mxu0 0.0
        %2317 = vmatpush1.msra.mxu0 %v2290
        %2318 = vmatprep.subr.mxu0 0.0
        %2319 = vmatpush1.msra.mxu0 %v2291
        %2320 = vmatprep.subr.mxu0 0.0
        %2321 = vmatpush1.msra.mxu0 %v2292
        %2322 = vmatprep.subr.mxu0 0.0
        %2323 = vmatpush1.msra.mxu0 %v2293
        %2324 = vmatprep.subr.mxu0 0.0
        %2325 = vmatpush1.msra.mxu0 0.0
        %2326 = vmatprep.subr.mxu0 0.0
        %2327 = vmatpush1.msra.mxu0 0.0
        %2328 = vmatprep.subr.mxu0 0.0
        %2329 = vmatpush1.msra.mxu0 0.0
        %2330 = vmatprep.subr.mxu0 0.0
        %2331 = vmatpush1.msra.mxu0 0.0
        %2332 = vmatprep.subr.mxu0 0.0
        %2333 = vmatpush1.msra.mxu0 0.0
        %2334 = vmatprep.subr.mxu0 0.0
        %2335 = vmatpush1.msra.mxu0 0.0
        %2336 = vmatprep.subr.mxu0 0.0
        %2337 = vmatpush1.msra.mxu0 0.0
        %2338 = vmatprep.subr.mxu0 0.0
        %2339 = vmatpush1.msra.mxu0 0.0
        %2340 = vmatprep.subr.mxu0 0.0
        %2341 = vmatpush1.msra.mxu0 0.0
        %2342 = vmatprep.subr.mxu0 0.0
        %2343 = vmatpush1.msra.mxu0 0.0
        %2344 = vmatprep.subr.mxu0 0.0
        %2345 = vmatpush1.msra.mxu0 0.0
        %2346 = vmatprep.subr.mxu0 0.0
        %2347 = vmatpush1.msra.mxu0 0.0
        %2348 = vmatprep.subr.mxu0 0.0
        %2349 = vmatpush1.msra.mxu0 0.0
        %2350 = vmatprep.subr.mxu0 0.0
        %2351 = vmatpush1.msra.mxu0 0.0
        %2352 = vmatprep.subr.mxu0 0.0
        %2353 = vmatpush1.msra.mxu0 0.0
        %2354 = vmatprep.subr.mxu0 0.0
        %2355 = vmatpush1.msra.mxu0 0.0
        %2356 = vmatprep.subr.mxu0 0.0
        %2357 = vmatpush1.msra.mxu0 0.0
        %2358 = vmatprep.subr.mxu0 0.0
        %2359 = vmatpush1.msra.mxu0 0.0
        %2360 = vmatprep.subr.mxu0 0.0
        %2361 = vmatpush1.msra.mxu0 0.0
        %2362 = vmatprep.subr.mxu0 0.0
        %2363 = vmatpush1.msra.mxu0 0.0
        %2364 = vmatprep.subr.mxu0 0.0
        %2365 = vmatpush1.msra.mxu0 0.0
        %2366 = vmatprep.subr.mxu0 0.0
        %2367 = vmatpush1.msra.mxu0 0.0
        %2368 = vmatprep.subr.mxu0 0.0
        %2369 = vmatpush1.msra.mxu0 0.0
        %2370 = vmatprep.subr.mxu0 0.0
        %2371 = vmatpush1.msra.mxu0 0.0
        %2372 = vmatprep.mubr.f32.mxu0 0.0
        %2373 = vmatmul.mubr.f32.gmra.mrb[0].mxu0 %v2303
        %v2374 = vpop.f32.mrb[0].mxu0
        %v2375 = vadd.f32 %v2299, %v2374
        %v2376 = vpop.f32.mrb[0].mxu0
        %2377 = vmatprep.mubr.f32.mxu0 0.0
        %2378 = vmatmul.mubr.f32.gmra.mrb[0].mxu0 %v2306
        %v2379 = vpop.f32.mrb[0].mxu0
        %v2380 = vadd.f32 %v2299, %v2379
        %v2381 = vpop.f32.mrb[0].mxu0
        %2382 = vdwg.mxu0
        %v2383 = vadd.f32 %v2375, %v2190
        %v2384 = vadd.f32 %v2380, %v2191
        %v2385 = vld [vmem:[%s9] sm:$0x1]
        %v2386 = vld [vmem:[%s10] sm:$0x1]
        %v2387 = vsel %vm409, %v2383, 0.0
        %2388 = vadd.xlane.f32.xlu0 %v2387
        %v2389 = vpop.xlane.xlu0 %2388
        %v2390 = vsel %vm409, %v2384, 0.0
        %2391 = vadd.xlane.f32.xlu0 %v2390
        %v2392 = vpop.xlane.xlu0 %2391
        %v2393 = vmul.f32 %v2389, %v2155
        %v2394 = vmul.f32 %v2392, %v2155
        %v2395 = vsub.f32 %v2383, %v2393
        %v2396 = vsub.f32 %v2384, %v2394
        %v2397 = vmul.f32 %v2395, %v2395
        %v2398 = vmul.f32 %v2396, %v2396
        %v2399 = vsel %vm409, %v2397, 0.0
        %2400 = vadd.xlane.f32.xlu0 %v2399
        %v2401 = vpop.xlane.xlu0 %2400
        %v2402 = vsel %vm409, %v2398, 0.0
        %2403 = vadd.xlane.f32.xlu0 %v2402
        %v2404 = vpop.xlane.xlu0 %2403
        %v2405 = vmul.f32 %v2401, %v2155
        %v2406 = vmul.f32 %v2404, %v2155
        %v2407 = vadd.f32 %v2405, 1e-05
        %v2408 = vadd.f32 %v2406, 1e-05
        %v2409 = vrsqrt.pop %v2407
        %v2410 = vrsqrt.pop %v2408
        %v2411 = vmul.f32 %v2395, %v2409
        %v2412 = vmul.f32 %v2396, %v2410
        %v2414 = vlaneseq
        %v2415 = vshrl.u32 %v2414, 7
        %v2416 = vsub.s32 0, %v2415
        %v2417 = vrot.slane %v2385, %v2416
        %v2419 = vmul.f32 %v2411, %v2417
        %v2420 = vmul.f32 %v2412, %v2417
        %v2422 = vlaneseq
        %v2423 = vshrl.u32 %v2422, 7
        %v2424 = vsub.s32 0, %v2423
        %v2425 = vrot.slane %v2386, %v2424
        %v2427 = vadd.f32 %v2419, %v2425
        %v2428 = vadd.f32 %v2420, %v2425
        %2429 = vst.msk [vmem:[%s395] sm:$0xff] %vm409, %v2427
        %2430 = vst.msk [vmem:[%s395 + $0x8] sm:$0xff] %vm409, %v2428
        %s2431 = sand.u32 %s270, 1
        %s2432 = scalar_lea.sflag [#allocation4], %s2431
        %s2433 = sand.u32 %s270, 1
        %s2434 = smul.addr %s2433, 16
        %s2435 = scalar_lea.vmem [#allocation5], %s2434
        // Predicated region
        $region69: #{tpu_custom_call.1} parent=63 // pred_check
          %p2436 = pneg %p280
        $region70: #{tpu_custom_call.1} parent=63 // pred_check_branch
          %2438 = sbr.rel (%p2436) target = $region72
        $region71: #{tpu_custom_call.1} parent=63 // pred_region
          %s2439 = smul.u32 2, %s26
          %s2441 = ssub.s32 256, 256
          %2442 = vsyncadd %s2432, %s2441
          %s2443 = smul.addr %s2439, 128
          %s2444 = scalar_lea.hbm %s11, %s2443
          %s2445 = sshll.u32 %s2435, 4
          %s2446 = int_to_ptr.vmem [resolvable:$true] %s2445
          %2451 = dma.vmem_to_hbm [thread:$0]  %s2446, 256, %s2444, %s2432, 128, 128, 8
        $region72: #{tpu_custom_call.1} parent=63 // pred_fallthru
          _
      $region64: #{tpu_custom_call.1} parent=5 // pred_fallthru
        _
      %p2452 = scmp.le.s32.totalorder 2, %s21
      // Predicated region
      $region73: #{tpu_custom_call.1} parent=5 // pred_check
        %p2453 = pneg %p2452
      $region74: #{tpu_custom_call.1} parent=5 // pred_check_branch
        %2455 = sbr.rel (%p2453) target = $region76
      $region75: #{tpu_custom_call.1} parent=5 // pred_region
        %s2456 = ssub.s32 %s21, 2
        // Predicated region
        $region77: #{tpu_custom_call.1} parent=75 // pred_check
          %p2457 = pneg %p286
        $region78: #{tpu_custom_call.1} parent=75 // pred_check_branch
          %2459 = sbr.rel (%p2457) target = $region80
        $region79: #{tpu_custom_call.1} parent=75 // pred_region
          %s2460 = sand.u32 %s271, 1
          %s2461 = scalar_lea.sflag [#allocation4], %s2460
          %s2462 = sand.u32 %s271, 1
          %s2463 = smul.addr %s2462, 16
          %s2464 = scalar_lea.vmem [#allocation5], %s2463
          %2465 = dma.done %s2461, 256
        $region80: #{tpu_custom_call.1} parent=75 // pred_fallthru
          _
      $region76: #{tpu_custom_call.1} parent=5 // pred_fallthru
        _
    $region6: #{tpu_custom_call.1} parent=1 // loop_footer
      %s25 = sadd.s32 1, %s21
    $region7: #{tpu_custom_call.1} parent=1 // loop_footer_branch
      %20 = sbr.rel target = $region3
    $region8: #{tpu_custom_call.1} parent=1 // loop_exit
      _
    %2466 = vsyncpa [#allocation3], 1
    %s2467 = scalar_lea.sflag [#allocation3], 1
    %2468 = vsyncpa %s2467, 1
    %2469 = vsyncpa [#allocation4], 1
    %s2470 = scalar_lea.sflag [#allocation4], 1
    %2471 = vsyncpa %s2470, 1

</llo_original>
